<compile_context>
chip_gen: v5e
topology: v5e:2x2
jax: 0.10.0
libtpu: 0.0.40
codegen_flags: <defaults>
</compile_context>

<pallas_src>
import functools
import math

import jax
import jax.numpy as jnp
import numpy as np
from jax.experimental import pallas as pl
from jax.experimental.pallas import tpu as pltpu


_LANES = 512          # lane width presented to the kernel (multiple of 128)
_RESEED_EVERY = 2     # exact sin/cos every N octaves; double-angle in between


def _round_up(a, b):
    return ((a + b - 1) // b) * b


def _vmem_budget_and_limit():
    """Returns (double-buffered tile budget, vmem_limit_bytes) per TPU gen."""
    cap = None
    try:
        info = pltpu.get_tpu_info()
        for name in ("vmem_capacity_bytes", "vmem_bytes", "vmem_size_bytes"):
            cap = getattr(info, name, None)
            if cap:
                break
    except Exception:
        cap = None
    if cap is not None and cap >= 96 * 1024 * 1024:
        # v5e / v6e: 128 MiB physical VMEM -> generous tiles.
        return 32 * 1024 * 1024, 64 * 1024 * 1024
    # v7x (64 MiB physical) or unknown: stay comfortably inside 64 MiB.
    return 20 * 1024 * 1024, 48 * 1024 * 1024


def _pos_embed_kernel(x_ref, o_ref, *, n_freqs):
    """Lane-dense positional-encoding tile.

    x_ref : (TM, L)       flat element stream (VMEM)
    o_ref : (2F, TM, L)   o_ref[2k] = sin(2^k * x), o_ref[2k+1] = cos(2^k * x)
    """
    x = x_ref[...].astype(jnp.float32)
    s = c = None
    for k in range(n_freqs):                      # static unroll, F is small
        if k % _RESEED_EVERY == 0:
            # Exact re-seed: 2**k is a power of two, so (2**k) * x is exact.
            t = x if k == 0 else (2.0 ** k) * x
            s = jnp.sin(t)
            c = jnp.cos(t)
        else:
            # Power-of-two double-angle recurrence (VPU only, no EUP work):
            #   sin(2t) = 2 sin t cos t ;  cos(2t) = 2 cos^2 t - 1
            s, c = 2.0 * s * c, 2.0 * c * c - 1.0
        # Per-frequency direct, full-lane-width stores (no concatenate).
        o_ref[2 * k] = s.astype(o_ref.dtype)
        o_ref[2 * k + 1] = c.astype(o_ref.dtype)


@functools.partial(jax.jit,
                   static_argnames=("n_freqs", "out_dtype", "native_layout"))
def _pos_embedding_impl(x, n_freqs, out_dtype, native_layout):
    orig_shape = x.shape
    c_in = orig_shape[-1]
    n_elems = math.prod(orig_shape)
    two_f = 2 * n_freqs
    lanes = _LANES

    in_item = np.dtype(x.dtype).itemsize
    out_item = np.dtype(out_dtype).itemsize
    row_align = 16 if out_item < 4 else 8       # bf16 packs (16, 128)

    tile_budget, vmem_limit = _vmem_budget_and_limit()

    # VMEM bytes per kernel row: double-buffered input + 2F double-buffered
    # output planes + ~6 fp32 planes of temporaries (x, t, s, c, cast copies).
    bytes_per_row = (2 * in_item + 2 * two_f * out_item + 6 * 4) * lanes

    n_rows = int(pl.cdiv(n_elems, lanes))
    n_rows_min = _round_up(n_rows, row_align)

    tm = max(row_align,
             (tile_budget // bytes_per_row) // row_align * row_align)
    tm = min(tm, 4096, n_rows_min)
    if n_rows_min >= 2 * row_align:
        # Keep >= 2 grid steps so v7x's second TensorCore is never idle.
        tm = min(tm, max(row_align,
                         (n_rows_min // 2) // row_align * row_align))

    n_rows_pad = _round_up(n_rows, tm)
    grid = n_rows_pad // tm
    n_padded = n_rows_pad * lanes

    # Flat element stream, zero-padded so every tile is full.
    x_flat = x.reshape(-1)
    pad = n_padded - n_elems
    if pad:
        # TODO(synk): ragged-tail handling inside the kernel would avoid this
        # input-sized pad copy (~1/(2F) of the output traffic).
        x_flat = jnp.pad(x_flat, (0, pad))
    x2d = x_flat.reshape(n_rows_pad, lanes)

    cost = pl.CostEstimate(
        flops=int(6 * n_freqs * n_padded),
        transcendentals=int(2 * (-(-n_freqs // _RESEED_EVERY)) * n_padded),
        bytes_accessed=int(n_padded * in_item + two_f * n_padded * out_item),
    )

    kernel = functools.partial(_pos_embed_kernel, n_freqs=n_freqs)
    out = pl.pallas_call(
        kernel,
        out_shape=jax.ShapeDtypeStruct((two_f, n_rows_pad, lanes), out_dtype),
        grid=(grid,),
        in_specs=[pl.BlockSpec((tm, lanes), lambda i: (i, 0))],
        out_specs=pl.BlockSpec((two_f, tm, lanes), lambda i: (0, i, 0)),
        compiler_params=pltpu.CompilerParams(
            dimension_semantics=("parallel",),
            vmem_limit_bytes=vmem_limit,
        ),
        cost_estimate=cost,
    )(x2d)

    # (2F, padded flat) -> (2F, *orig_shape)
    out = out.reshape(two_f, n_padded)[:, :n_elems]
    out = out.reshape((two_f,) + orig_shape)
    if native_layout:
        # Reviewer "Option A": freq-major kernel-native layout; the consumer
        # permutes its first-layer weights instead of us paying a transpose.
        return out
    # Single fused XLA pass (under jit) producing the exact PyTorch layout:
    # (*lead, [sin f0*C | cos f0*C | sin f1*C | ...]).
    out = jnp.moveaxis(out, 0, -2)                 # (*lead, 2F, C)
    return out.reshape(orig_shape[:-1] + (two_f * c_in,))


def pos_embedding(x, n_freqs, *, out_dtype=None, native_layout=False):
    """JAX/Pallas equivalent of PosEmbedding(N_freqs)(x).

    out_dtype: pass jnp.bfloat16 when the consumer is bf16 - halves the
      dominant HBM writeback (and the output transpose bytes), ~1.8x faster.
    native_layout: return (2F, *x.shape) freq-major planes
      (out[2k] = sin(2^k x), out[2k+1] = cos(2^k x)) and skip the output
      transpose entirely (consumer folds the permutation into its weights).
    """
    if n_freqs < 1:
        raise ValueError("n_freqs must be >= 1")
    out_dtype = np.dtype(x.dtype if out_dtype is None else out_dtype)
    return _pos_embedding_impl(x, n_freqs=int(n_freqs), out_dtype=out_dtype,
                               native_layout=bool(native_layout))


def pos_embedding_ref(x, n_freqs):
    """Pure-JAX reference mirroring the PyTorch loop exactly."""
    outs = []
    for k in range(n_freqs):
        f = 2.0 ** k
        outs.append(jnp.sin(f * x))
        outs.append(jnp.cos(f * x))
    return jnp.concatenate(outs, axis=-1)


if __name__ == "__main__":
    key = jax.random.PRNGKey(0)
    # batch=2, rays=8, xyz coords=3 (typical NeRF positional-encoding input)
    x_small = jax.random.normal(key, (2, 8, 3), dtype=jnp.float32)
    # Larger batch to exercise a multi-step grid (still small).
    x_big = jax.random.normal(key, (4, 1024, 3), dtype=jnp.float32)

    # N_freqs = 4 (direction embedding) and 10 (xyz embedding) in NeRF.
    for nf in (4, 10):
        for xx in (x_small, x_big):
            out = jax.block_until_ready(pos_embedding(xx, nf))
            ref = pos_embedding_ref(xx, nf)
            assert out.shape == xx.shape[:-1] + (xx.shape[-1] * 2 * nf,), out.shape
            assert jnp.allclose(out, ref, atol=1e-4, rtol=1e-4), (nf, xx.shape)

    # bf16 fast path (halves HBM writeback for bf16 consumers).
    out_bf16 = jax.block_until_ready(
        pos_embedding(x_big, 10, out_dtype=jnp.bfloat16))
    ref = pos_embedding_ref(x_big, 10)
    assert out_bf16.dtype == jnp.bfloat16
    assert jnp.allclose(out_bf16.astype(jnp.float32), ref, atol=2e-2, rtol=2e-2)

    # Kernel-native layout (reviewer Option A): no output transpose at all.
    nat = jax.block_until_ready(pos_embedding(x_small, 4, native_layout=True))
    assert nat.shape == (8,) + x_small.shape, nat.shape
    assert jnp.allclose(nat[0], jnp.sin(x_small), atol=1e-4, rtol=1e-4)
    assert jnp.allclose(nat[1], jnp.cos(x_small), atol=1e-4, rtol=1e-4)

    print("KERNEL_OK")
</pallas_src>

<mosaic_0001>
module attributes {stable_mosaic.version = 11 : i64} {
  func.func @_pos_embed_kernel(%arg0: i32, %arg1: memref<8x512xf32, #tpu.memory_space<vmem>>, %arg2: memref<8x8x512xf32, #tpu.memory_space<vmem>>) attributes {dimension_semantics = [#tpu.dimension_semantics<parallel>], iteration_bounds = array<i64: 1>, scalar_prefetch = 0 : i64, scratch_operands = 0 : i64, tpu.core_type = #tpu.core_type<tc>, window_params = [{transform_indices = @transform_0, window_bounds = array<i64: 8, 512>}, {transform_indices = @transform_1, window_bounds = array<i64: 8, 8, 512>}]} {
    %c0 = arith.constant 0 : index
    %c0_0 = arith.constant 0 : index
    %0 = vector.load %arg1[%c0, %c0_0] : memref<8x512xf32, #tpu.memory_space<vmem>>, vector<8x512xf32>
    %1 = math.sin %0 : vector<8x512xf32>
    %2 = math.cos %0 : vector<8x512xf32>
    %c0_1 = arith.constant 0 : index
    %c0_2 = arith.constant 0 : index
    %c0_3 = arith.constant 0 : index
    %3 = vector.load %arg2[%c0_1, %c0_2, %c0_3] : memref<8x8x512xf32, #tpu.memory_space<vmem>>, vector<1x8x512xf32>
    %4 = vector.shape_cast %3 : vector<1x8x512xf32> to vector<8x512xf32>
    %5 = vector.shape_cast %1 : vector<8x512xf32> to vector<1x8x512xf32>
    tpu.vector_store %arg2[%c0_1, %c0_2, %c0_3], %5 {strides = array<i32>} : memref<8x8x512xf32, #tpu.memory_space<vmem>>, vector<1x8x512xf32>,
    %c1 = arith.constant 1 : index
    %c0_4 = arith.constant 0 : index
    %c0_5 = arith.constant 0 : index
    %6 = vector.load %arg2[%c1, %c0_4, %c0_5] : memref<8x8x512xf32, #tpu.memory_space<vmem>>, vector<1x8x512xf32>
    %7 = vector.shape_cast %6 : vector<1x8x512xf32> to vector<8x512xf32>
    %8 = vector.shape_cast %2 : vector<8x512xf32> to vector<1x8x512xf32>
    tpu.vector_store %arg2[%c1, %c0_4, %c0_5], %8 {strides = array<i32>} : memref<8x8x512xf32, #tpu.memory_space<vmem>>, vector<1x8x512xf32>,
    %cst = arith.constant 2.000000e+00 : f32
    %9 = vector.broadcast %cst : f32 to vector<8x512xf32>
    %10 = arith.mulf %9, %1 : vector<8x512xf32>
    %11 = arith.mulf %10, %2 : vector<8x512xf32>
    %cst_6 = arith.constant 2.000000e+00 : f32
    %12 = vector.broadcast %cst_6 : f32 to vector<8x512xf32>
    %13 = arith.mulf %12, %2 : vector<8x512xf32>
    %14 = arith.mulf %13, %2 : vector<8x512xf32>
    %cst_7 = arith.constant 1.000000e+00 : f32
    %15 = vector.broadcast %cst_7 : f32 to vector<8x512xf32>
    %16 = arith.subf %14, %15 : vector<8x512xf32>
    %c2 = arith.constant 2 : index
    %c0_8 = arith.constant 0 : index
    %c0_9 = arith.constant 0 : index
    %17 = vector.load %arg2[%c2, %c0_8, %c0_9] : memref<8x8x512xf32, #tpu.memory_space<vmem>>, vector<1x8x512xf32>
    %18 = vector.shape_cast %17 : vector<1x8x512xf32> to vector<8x512xf32>
    %19 = vector.shape_cast %11 : vector<8x512xf32> to vector<1x8x512xf32>
    tpu.vector_store %arg2[%c2, %c0_8, %c0_9], %19 {strides = array<i32>} : memref<8x8x512xf32, #tpu.memory_space<vmem>>, vector<1x8x512xf32>,
    %c3 = arith.constant 3 : index
    %c0_10 = arith.constant 0 : index
    %c0_11 = arith.constant 0 : index
    %20 = vector.load %arg2[%c3, %c0_10, %c0_11] : memref<8x8x512xf32, #tpu.memory_space<vmem>>, vector<1x8x512xf32>
    %21 = vector.shape_cast %20 : vector<1x8x512xf32> to vector<8x512xf32>
    %22 = vector.shape_cast %16 : vector<8x512xf32> to vector<1x8x512xf32>
    tpu.vector_store %arg2[%c3, %c0_10, %c0_11], %22 {strides = array<i32>} : memref<8x8x512xf32, #tpu.memory_space<vmem>>, vector<1x8x512xf32>,
    %cst_12 = arith.constant 4.000000e+00 : f32
    %23 = vector.broadcast %cst_12 : f32 to vector<8x512xf32>
    %24 = arith.mulf %23, %0 : vector<8x512xf32>
    %25 = math.sin %24 : vector<8x512xf32>
    %26 = math.cos %24 : vector<8x512xf32>
    %c4 = arith.constant 4 : index
    %c0_13 = arith.constant 0 : index
    %c0_14 = arith.constant 0 : index
    %27 = vector.load %arg2[%c4, %c0_13, %c0_14] : memref<8x8x512xf32, #tpu.memory_space<vmem>>, vector<1x8x512xf32>
    %28 = vector.shape_cast %27 : vector<1x8x512xf32> to vector<8x512xf32>
    %29 = vector.shape_cast %25 : vector<8x512xf32> to vector<1x8x512xf32>
    tpu.vector_store %arg2[%c4, %c0_13, %c0_14], %29 {strides = array<i32>} : memref<8x8x512xf32, #tpu.memory_space<vmem>>, vector<1x8x512xf32>,
    %c5 = arith.constant 5 : index
    %c0_15 = arith.constant 0 : index
    %c0_16 = arith.constant 0 : index
    %30 = vector.load %arg2[%c5, %c0_15, %c0_16] : memref<8x8x512xf32, #tpu.memory_space<vmem>>, vector<1x8x512xf32>
    %31 = vector.shape_cast %30 : vector<1x8x512xf32> to vector<8x512xf32>
    %32 = vector.shape_cast %26 : vector<8x512xf32> to vector<1x8x512xf32>
    tpu.vector_store %arg2[%c5, %c0_15, %c0_16], %32 {strides = array<i32>} : memref<8x8x512xf32, #tpu.memory_space<vmem>>, vector<1x8x512xf32>,
    %cst_17 = arith.constant 2.000000e+00 : f32
    %33 = vector.broadcast %cst_17 : f32 to vector<8x512xf32>
    %34 = arith.mulf %33, %25 : vector<8x512xf32>
    %35 = arith.mulf %34, %26 : vector<8x512xf32>
    %cst_18 = arith.constant 2.000000e+00 : f32
    %36 = vector.broadcast %cst_18 : f32 to vector<8x512xf32>
    %37 = arith.mulf %36, %26 : vector<8x512xf32>
    %38 = arith.mulf %37, %26 : vector<8x512xf32>
    %cst_19 = arith.constant 1.000000e+00 : f32
    %39 = vector.broadcast %cst_19 : f32 to vector<8x512xf32>
    %40 = arith.subf %38, %39 : vector<8x512xf32>
    %c6 = arith.constant 6 : index
    %c0_20 = arith.constant 0 : index
    %c0_21 = arith.constant 0 : index
    %41 = vector.load %arg2[%c6, %c0_20, %c0_21] : memref<8x8x512xf32, #tpu.memory_space<vmem>>, vector<1x8x512xf32>
    %42 = vector.shape_cast %41 : vector<1x8x512xf32> to vector<8x512xf32>
    %43 = vector.shape_cast %35 : vector<8x512xf32> to vector<1x8x512xf32>
    tpu.vector_store %arg2[%c6, %c0_20, %c0_21], %43 {strides = array<i32>} : memref<8x8x512xf32, #tpu.memory_space<vmem>>, vector<1x8x512xf32>,
    %c7 = arith.constant 7 : index
    %c0_22 = arith.constant 0 : index
    %c0_23 = arith.constant 0 : index
    %44 = vector.load %arg2[%c7, %c0_22, %c0_23] : memref<8x8x512xf32, #tpu.memory_space<vmem>>, vector<1x8x512xf32>
    %45 = vector.shape_cast %44 : vector<1x8x512xf32> to vector<8x512xf32>
    %46 = vector.shape_cast %40 : vector<8x512xf32> to vector<1x8x512xf32>
    tpu.vector_store %arg2[%c7, %c0_22, %c0_23], %46 {strides = array<i32>} : memref<8x8x512xf32, #tpu.memory_space<vmem>>, vector<1x8x512xf32>,
    return
  }
  func.func @transform_0(%arg0: i32) -> (i32, i32) {
    %c0_i32 = arith.constant 0 : i32
    %c0_i32_0 = arith.constant 0 : i32
    return %arg0, %c0_i32 : i32, i32
  }
  func.func @transform_1(%arg0: i32) -> (i32, i32, i32) {
    %c0_i32 = arith.constant 0 : i32
    %c0_i32_0 = arith.constant 0 : i32
    %c0_i32_1 = arith.constant 0 : i32
    return %c0_i32, %arg0, %c0_i32_0 : i32, i32, i32
  }
}

</mosaic_0001>

<llo_original>
// kernel: _pos_embedding_impl.1
$region0: #{_pos_embedding_impl.1}
  #allocation0 [shape = 'u32[]', space=smem, size = 0x4, offset = 0x4, fixed_abs, tag = 'smem constant byte address 0x4 - core index']
  #allocation1 [shape = 'u32[72,128]{1,0:T(1,128)}', space=vmem, size = 0x9000, scoped, tag = 'internal scratch']
  %s0 = inlined_call_operand.vmem [shape: f32[8,512], index: 0, kind: input, shape index: {}]
  %s1 = inlined_call_operand.vmem [shape: f32[8,8,512], index: 1, kind: output, shape index: {}]
  %s2 = sld [smem:[#allocation0]]
  $region14: #{_pos_embedding_impl.1} parent=0
    _
  %s4 = ssub.s32 1, %s2
  %s5 = scalar_select 0, %s4, %s2
  // Predicated region
  $region2: #{_pos_embedding_impl.1} parent=0 // pred_check
    _
  $region3: #{_pos_embedding_impl.1} parent=0 // pred_check_branch
    %7 = sbr.rel (0) target = $region5
  $region4: #{_pos_embedding_impl.1} parent=0 // pred_region
    _
  $region5: #{_pos_embedding_impl.1} parent=0 // pred_fallthru
    _
  %v8 = vld [vmem:[%s0] sm:$0xff]
  %v9 = vld [vmem:[%s0 + $0x8] sm:$0xff]
  %v10 = vld [vmem:[%s0 + $0x10] sm:$0xff]
  %v11 = vld [vmem:[%s0 + $0x18] sm:$0xff]
  %v12 = vand.u32 2147483647, %v8
  %vm13 = vcmp.le.f32.partialorder %v12, 0.7853982
  %vm14 = vcmp.lt.s32.totalorder %v8, 0
  %v15 = vand.u32 %v8, 2139095040
  %v16 = vshrl.u32 %v15, 23
  %v17 = vsub.s32 %v16, 127
  %v18 = vand.u32 2147483647, %v8
  %v19 = vand.u32 %v18, 8388607
  %v20 = vor.u32 %v19, 8388608
  %v21 = vsub.s32 0, %v20
  %v22 = vadd.s32 %v17, 1
  %vm23 = vcmp.gt.s32.totalorder %v22, 0
  %v24 = vsel %vm23, %v22, 0
  %v25 = vshrl.u32 %v24, 5
  %v26 = vand.u32 %v24, 31
  %v27 = vsub.s32 32, %v26
  %v28 = vshrl.u32 683565275, %v27
  %v29 = vshll.u32 683565275, %v26
  %v30 = vshrl.u32 2475754826, %v27
  %v31 = vor.u32 %v29, %v30
  %v32 = vshll.u32 2475754826, %v26
  %v33 = vshrl.u32 2131351028, %v27
  %v34 = vor.u32 %v32, %v33
  %v35 = vshll.u32 2131351028, %v26
  %v36 = vshrl.u32 2102212464, %v27
  %v37 = vor.u32 %v35, %v36
  %v38 = vshll.u32 2102212464, %v26
  %v39 = vshrl.u32 920167782, %v27
  %v40 = vor.u32 %v38, %v39
  %v41 = vshll.u32 920167782, %v26
  %v42 = vshrl.u32 1326507024, %v27
  %v43 = vor.u32 %v41, %v42
  %vm44 = vcmp.lt.s32.totalorder %v25, 1
  %vm45 = vcmp.lt.s32.totalorder %v25, 2
  %vm46 = vcmp.lt.s32.totalorder %v25, 3
  %vm47 = vcmp.lt.s32.totalorder %v25, 4
  %v48 = vsel %vm44, %v28, %v31
  %v49 = vsel %vm47, %v37, 2102212464
  %v50 = vsel %vm46, %v34, %v49
  %v51 = vsel %vm45, %v48, %v50
  %v52 = vsel %vm44, %v31, %v34
  %v53 = vsel %vm47, %v40, 920167782
  %v54 = vsel %vm46, %v37, %v53
  %v55 = vsel %vm45, %v52, %v54
  %v56 = vsel %vm44, %v34, %v37
  %v57 = vsel %vm47, %v43, 1326507024
  %v58 = vsel %vm46, %v40, %v57
  %v59 = vsel %vm45, %v56, %v58
  %v60 = vshll.u32 %v20, 8
  %v61 = vand.u32 %v60, 65535
  %v62 = vshrl.u32 %v60, 16
  %v63 = vand.u32 %v59, 65535
  %v64 = vshrl.u32 %v59, 16
  %v65 = vmul.u32 %v61, %v63
  %v66 = vmul.u32 %v61, %v64
  %v67 = vmul.u32 %v62, %v63
  %v68 = vmul.u32 %v62, %v64
  %v69 = vshll.u32 %v66, 16
  %v70 = vshrl.u32 %v66, 16
  %v71 = vshll.u32 %v67, 16
  %v72 = vshrl.u32 %v67, 16
  %vm73 = vc.u32 %v65, %v69
  %v74 = vsel %vm73, 1, 0
  %v75 = vadd.s32 %v65, %v69
  %v76 = vadd.s32 %v68, %v74
  %vm77 = vc.u32 %v75, %v71
  %v78 = vsel %vm77, 1, 0
  %v79 = vadd.s32 %v75, %v71
  %v80 = vadd.s32 %v76, %v78
  %v81 = vadd.s32 %v80, %v70
  %v82 = vadd.s32 %v81, %v72
  %v83 = vand.u32 %v60, 65535
  %v84 = vshrl.u32 %v60, 16
  %v85 = vand.u32 %v55, 65535
  %v86 = vshrl.u32 %v55, 16
  %v87 = vmul.u32 %v83, %v85
  %v88 = vmul.u32 %v83, %v86
  %v89 = vmul.u32 %v84, %v85
  %v90 = vmul.u32 %v84, %v86
  %v91 = vshll.u32 %v88, 16
  %v92 = vshrl.u32 %v88, 16
  %v93 = vshll.u32 %v89, 16
  %v94 = vshrl.u32 %v89, 16
  %vm95 = vc.u32 %v87, %v91
  %v96 = vsel %vm95, 1, 0
  %v97 = vadd.s32 %v87, %v91
  %v98 = vadd.s32 %v90, %v96
  %vm99 = vc.u32 %v97, %v93
  %v100 = vsel %vm99, 1, 0
  %v101 = vadd.s32 %v97, %v93
  %v102 = vadd.s32 %v98, %v100
  %v103 = vadd.s32 %v102, %v92
  %v104 = vadd.s32 %v103, %v94
  %v105 = vmul.u32 %v60, %v51
  %v106 = vadd.s32 %v82, %v101
  %vm107 = vc.u32 %v82, %v101
  %v108 = vadd.s32 %v104, 1
  %v109 = vsel %vm107, %v108, %v104
  %v110 = vadd.s32 %v105, %v109
  %v111 = vadd.s32 %v110, 536870912
  %v112 = vshrl.u32 %v111, 30
  %v113 = vshll.u32 %v112, 30
  %v114 = vsub.s32 %v110, %v113
  %vm115 = vcmp.lt.s32.totalorder %v114, 0
  %v116 = vsub.s32 0, %v114
  %v117 = vsel %vm115, %v116, %v114
  %v118 = vclz %v117
  %v119 = vsub.s32 %v118, 2
  %vm120 = vcmp.gt.s32.totalorder 0, %v119
  %v121 = vsel %vm120, 0, %v119
  %v122 = vsub.s32 32, %v121
  %v123 = vshll.u32 %v114, %v121
  %v124 = vshrl.u32 %v106, %v122
  %v125 = vor.u32 %v123, %v124
  %v126 = vsub.s32 4294967266, %v121
  %v127 = vadd.s32 %v126, 127
  %v128 = vshll.u32 %v127, 23
  %v129 = vor.u32 4788187, %v128
  %v130 = vand.u32 2147483647, %v129
  %v132 = vcvt.s32.f32 %v125
  %v133 = vmul.f32 %v132, %v130
  %v134 = vxor.u32 %v133, 2147483648
  %v135 = vsel %vm14, %v134, %v133
  %v136 = vsub.s32 4, %v112
  %v137 = vsel %vm14, %v136, %v112
  %v138 = vsel %vm13, %v8, %v135
  %v139 = vsel %vm13, 0, %v137
  %v140 = vmul.f32 %v138, %v138
  %v141 = vmul.f32 %v140, -0.001358992
  %v142 = vadd.f32 %v141, 0.041655596
  %v143 = vmul.f32 %v140, %v142
  %v144 = vadd.f32 %v143, -0.4999988
  %v145 = vmul.f32 %v140, %v144
  %v146 = vadd.f32 1.0, %v145
  %v147 = vmul.f32 %v138, %v138
  %v148 = vmul.f32 %v147, -0.00019511016
  %v149 = vadd.f32 %v148, 0.008332121
  %v150 = vmul.f32 %v147, %v149
  %v151 = vadd.f32 %v150, -0.16666654
  %v152 = vmul.f32 %v147, %v151
  %v153 = vadd.f32 %v152, 1.0
  %v154 = vmul.f32 %v153, %v138
  %vm155 = vweird.f32 %v8
  %v156 = vadd.s32 %v139, 3
  %v157 = vand.u32 %v156, 3
  %vm158 = vcmp.lt.s32.totalorder %v157, 2
  %vm159 = vcmp.eq.s32.totalorder %v157, 0
  %v160 = vxor.u32 %v154, 2147483648
  %v161 = vsel %vm159, %v146, %v160
  %vm162 = vcmp.eq.s32.totalorder %v157, 2
  %v163 = vxor.u32 %v146, 2147483648
  %v164 = vsel %vm162, %v163, %v154
  %v165 = vsel %vm158, %v161, %v164
  %v166 = vsel %vm155, nan, %v165
  %v167 = vand.u32 2147483647, %v9
  %vm168 = vcmp.le.f32.partialorder %v167, 0.7853982
  %vm169 = vcmp.lt.s32.totalorder %v9, 0
  %v170 = vand.u32 %v9, 2139095040
  %v171 = vshrl.u32 %v170, 23
  %v172 = vsub.s32 %v171, 127
  %v173 = vand.u32 2147483647, %v9
  %v174 = vand.u32 %v173, 8388607
  %v175 = vor.u32 %v174, 8388608
  %v176 = vsub.s32 0, %v175
  %v177 = vadd.s32 %v172, 1
  %vm178 = vcmp.gt.s32.totalorder %v177, 0
  %v179 = vsel %vm178, %v177, 0
  %v180 = vshrl.u32 %v179, 5
  %v181 = vand.u32 %v179, 31
  %v182 = vsub.s32 32, %v181
  %v183 = vshrl.u32 683565275, %v182
  %v184 = vshll.u32 683565275, %v181
  %v185 = vshrl.u32 2475754826, %v182
  %v186 = vor.u32 %v184, %v185
  %v187 = vshll.u32 2475754826, %v181
  %v188 = vshrl.u32 2131351028, %v182
  %v189 = vor.u32 %v187, %v188
  %v190 = vshll.u32 2131351028, %v181
  %v191 = vshrl.u32 2102212464, %v182
  %v192 = vor.u32 %v190, %v191
  %v193 = vshll.u32 2102212464, %v181
  %v194 = vshrl.u32 920167782, %v182
  %v195 = vor.u32 %v193, %v194
  %v196 = vshll.u32 920167782, %v181
  %v197 = vshrl.u32 1326507024, %v182
  %v198 = vor.u32 %v196, %v197
  %vm199 = vcmp.lt.s32.totalorder %v180, 1
  %vm200 = vcmp.lt.s32.totalorder %v180, 2
  %vm201 = vcmp.lt.s32.totalorder %v180, 3
  %vm202 = vcmp.lt.s32.totalorder %v180, 4
  %v203 = vsel %vm199, %v183, %v186
  %v204 = vsel %vm202, %v192, 2102212464
  %v205 = vsel %vm201, %v189, %v204
  %v206 = vsel %vm200, %v203, %v205
  %v207 = vsel %vm199, %v186, %v189
  %v208 = vsel %vm202, %v195, 920167782
  %v209 = vsel %vm201, %v192, %v208
  %v210 = vsel %vm200, %v207, %v209
  %v211 = vsel %vm199, %v189, %v192
  %v212 = vsel %vm202, %v198, 1326507024
  %v213 = vsel %vm201, %v195, %v212
  %v214 = vsel %vm200, %v211, %v213
  %v215 = vshll.u32 %v175, 8
  %v216 = vand.u32 %v215, 65535
  %v217 = vshrl.u32 %v215, 16
  %v218 = vand.u32 %v214, 65535
  %v219 = vshrl.u32 %v214, 16
  %v220 = vmul.u32 %v216, %v218
  %v221 = vmul.u32 %v216, %v219
  %v222 = vmul.u32 %v217, %v218
  %v223 = vmul.u32 %v217, %v219
  %v224 = vshll.u32 %v221, 16
  %v225 = vshrl.u32 %v221, 16
  %v226 = vshll.u32 %v222, 16
  %v227 = vshrl.u32 %v222, 16
  %vm228 = vc.u32 %v220, %v224
  %v229 = vsel %vm228, 1, 0
  %v230 = vadd.s32 %v220, %v224
  %v231 = vadd.s32 %v223, %v229
  %vm232 = vc.u32 %v230, %v226
  %v233 = vsel %vm232, 1, 0
  %v234 = vadd.s32 %v230, %v226
  %v235 = vadd.s32 %v231, %v233
  %v236 = vadd.s32 %v235, %v225
  %v237 = vadd.s32 %v236, %v227
  %v238 = vand.u32 %v215, 65535
  %v239 = vshrl.u32 %v215, 16
  %v240 = vand.u32 %v210, 65535
  %v241 = vshrl.u32 %v210, 16
  %v242 = vmul.u32 %v238, %v240
  %v243 = vmul.u32 %v238, %v241
  %v244 = vmul.u32 %v239, %v240
  %v245 = vmul.u32 %v239, %v241
  %v246 = vshll.u32 %v243, 16
  %v247 = vshrl.u32 %v243, 16
  %v248 = vshll.u32 %v244, 16
  %v249 = vshrl.u32 %v244, 16
  %vm250 = vc.u32 %v242, %v246
  %v251 = vsel %vm250, 1, 0
  %v252 = vadd.s32 %v242, %v246
  %v253 = vadd.s32 %v245, %v251
  %vm254 = vc.u32 %v252, %v248
  %v255 = vsel %vm254, 1, 0
  %v256 = vadd.s32 %v252, %v248
  %v257 = vadd.s32 %v253, %v255
  %v258 = vadd.s32 %v257, %v247
  %v259 = vadd.s32 %v258, %v249
  %v260 = vmul.u32 %v215, %v206
  %v261 = vadd.s32 %v237, %v256
  %vm262 = vc.u32 %v237, %v256
  %v263 = vadd.s32 %v259, 1
  %v264 = vsel %vm262, %v263, %v259
  %v265 = vadd.s32 %v260, %v264
  %v266 = vadd.s32 %v265, 536870912
  %v267 = vshrl.u32 %v266, 30
  %v268 = vshll.u32 %v267, 30
  %v269 = vsub.s32 %v265, %v268
  %vm270 = vcmp.lt.s32.totalorder %v269, 0
  %v271 = vsub.s32 0, %v269
  %v272 = vsel %vm270, %v271, %v269
  %v273 = vclz %v272
  %v274 = vsub.s32 %v273, 2
  %vm275 = vcmp.gt.s32.totalorder 0, %v274
  %v276 = vsel %vm275, 0, %v274
  %v277 = vsub.s32 32, %v276
  %v278 = vshll.u32 %v269, %v276
  %v279 = vshrl.u32 %v261, %v277
  %v280 = vor.u32 %v278, %v279
  %v281 = vsub.s32 4294967266, %v276
  %v282 = vadd.s32 %v281, 127
  %v283 = vshll.u32 %v282, 23
  %v284 = vor.u32 4788187, %v283
  %v285 = vand.u32 2147483647, %v284
  %v287 = vcvt.s32.f32 %v280
  %v288 = vmul.f32 %v287, %v285
  %v289 = vxor.u32 %v288, 2147483648
  %v290 = vsel %vm169, %v289, %v288
  %v291 = vsub.s32 4, %v267
  %v292 = vsel %vm169, %v291, %v267
  %v293 = vsel %vm168, %v9, %v290
  %v294 = vsel %vm168, 0, %v292
  %v295 = vmul.f32 %v293, %v293
  %v296 = vmul.f32 %v295, -0.001358992
  %v297 = vadd.f32 %v296, 0.041655596
  %v298 = vmul.f32 %v295, %v297
  %v299 = vadd.f32 %v298, -0.4999988
  %v300 = vmul.f32 %v295, %v299
  %v301 = vadd.f32 1.0, %v300
  %v302 = vmul.f32 %v293, %v293
  %v303 = vmul.f32 %v302, -0.00019511016
  %v304 = vadd.f32 %v303, 0.008332121
  %v305 = vmul.f32 %v302, %v304
  %v306 = vadd.f32 %v305, -0.16666654
  %v307 = vmul.f32 %v302, %v306
  %v308 = vadd.f32 %v307, 1.0
  %v309 = vmul.f32 %v308, %v293
  %vm310 = vweird.f32 %v9
  %v311 = vadd.s32 %v294, 3
  %v312 = vand.u32 %v311, 3
  %vm313 = vcmp.lt.s32.totalorder %v312, 2
  %vm314 = vcmp.eq.s32.totalorder %v312, 0
  %v315 = vxor.u32 %v309, 2147483648
  %v316 = vsel %vm314, %v301, %v315
  %vm317 = vcmp.eq.s32.totalorder %v312, 2
  %v318 = vxor.u32 %v301, 2147483648
  %v319 = vsel %vm317, %v318, %v309
  %v320 = vsel %vm313, %v316, %v319
  %v321 = vsel %vm310, nan, %v320
  %v322 = vand.u32 2147483647, %v10
  %vm323 = vcmp.le.f32.partialorder %v322, 0.7853982
  %vm324 = vcmp.lt.s32.totalorder %v10, 0
  %v325 = vand.u32 %v10, 2139095040
  %v326 = vshrl.u32 %v325, 23
  %v327 = vsub.s32 %v326, 127
  %v328 = vand.u32 2147483647, %v10
  %v329 = vand.u32 %v328, 8388607
  %v330 = vor.u32 %v329, 8388608
  %v331 = vsub.s32 0, %v330
  %v332 = vadd.s32 %v327, 1
  %vm333 = vcmp.gt.s32.totalorder %v332, 0
  %v334 = vsel %vm333, %v332, 0
  %v335 = vshrl.u32 %v334, 5
  %v336 = vand.u32 %v334, 31
  %v337 = vsub.s32 32, %v336
  %v338 = vshrl.u32 683565275, %v337
  %v339 = vshll.u32 683565275, %v336
  %v340 = vshrl.u32 2475754826, %v337
  %v341 = vor.u32 %v339, %v340
  %v342 = vshll.u32 2475754826, %v336
  %v343 = vshrl.u32 2131351028, %v337
  %v344 = vor.u32 %v342, %v343
  %v345 = vshll.u32 2131351028, %v336
  %v346 = vshrl.u32 2102212464, %v337
  %v347 = vor.u32 %v345, %v346
  %v348 = vshll.u32 2102212464, %v336
  %v349 = vshrl.u32 920167782, %v337
  %v350 = vor.u32 %v348, %v349
  %v351 = vshll.u32 920167782, %v336
  %v352 = vshrl.u32 1326507024, %v337
  %v353 = vor.u32 %v351, %v352
  %vm354 = vcmp.lt.s32.totalorder %v335, 1
  %vm355 = vcmp.lt.s32.totalorder %v335, 2
  %vm356 = vcmp.lt.s32.totalorder %v335, 3
  %vm357 = vcmp.lt.s32.totalorder %v335, 4
  %v358 = vsel %vm354, %v338, %v341
  %v359 = vsel %vm357, %v347, 2102212464
  %v360 = vsel %vm356, %v344, %v359
  %v361 = vsel %vm355, %v358, %v360
  %v362 = vsel %vm354, %v341, %v344
  %v363 = vsel %vm357, %v350, 920167782
  %v364 = vsel %vm356, %v347, %v363
  %v365 = vsel %vm355, %v362, %v364
  %v366 = vsel %vm354, %v344, %v347
  %v367 = vsel %vm357, %v353, 1326507024
  %v368 = vsel %vm356, %v350, %v367
  %v369 = vsel %vm355, %v366, %v368
  %v370 = vshll.u32 %v330, 8
  %v371 = vand.u32 %v370, 65535
  %v372 = vshrl.u32 %v370, 16
  %v373 = vand.u32 %v369, 65535
  %v374 = vshrl.u32 %v369, 16
  %v375 = vmul.u32 %v371, %v373
  %v376 = vmul.u32 %v371, %v374
  %v377 = vmul.u32 %v372, %v373
  %v378 = vmul.u32 %v372, %v374
  %v379 = vshll.u32 %v376, 16
  %v380 = vshrl.u32 %v376, 16
  %v381 = vshll.u32 %v377, 16
  %v382 = vshrl.u32 %v377, 16
  %vm383 = vc.u32 %v375, %v379
  %v384 = vsel %vm383, 1, 0
  %v385 = vadd.s32 %v375, %v379
  %v386 = vadd.s32 %v378, %v384
  %vm387 = vc.u32 %v385, %v381
  %v388 = vsel %vm387, 1, 0
  %v389 = vadd.s32 %v385, %v381
  %v390 = vadd.s32 %v386, %v388
  %v391 = vadd.s32 %v390, %v380
  %v392 = vadd.s32 %v391, %v382
  %v393 = vand.u32 %v370, 65535
  %v394 = vshrl.u32 %v370, 16
  %v395 = vand.u32 %v365, 65535
  %v396 = vshrl.u32 %v365, 16
  %v397 = vmul.u32 %v393, %v395
  %v398 = vmul.u32 %v393, %v396
  %v399 = vmul.u32 %v394, %v395
  %v400 = vmul.u32 %v394, %v396
  %v401 = vshll.u32 %v398, 16
  %v402 = vshrl.u32 %v398, 16
  %v403 = vshll.u32 %v399, 16
  %v404 = vshrl.u32 %v399, 16
  %vm405 = vc.u32 %v397, %v401
  %v406 = vsel %vm405, 1, 0
  %v407 = vadd.s32 %v397, %v401
  %v408 = vadd.s32 %v400, %v406
  %vm409 = vc.u32 %v407, %v403
  %v410 = vsel %vm409, 1, 0
  %v411 = vadd.s32 %v407, %v403
  %v412 = vadd.s32 %v408, %v410
  %v413 = vadd.s32 %v412, %v402
  %v414 = vadd.s32 %v413, %v404
  %v415 = vmul.u32 %v370, %v361
  %v416 = vadd.s32 %v392, %v411
  %vm417 = vc.u32 %v392, %v411
  %v418 = vadd.s32 %v414, 1
  %v419 = vsel %vm417, %v418, %v414
  %v420 = vadd.s32 %v415, %v419
  %v421 = vadd.s32 %v420, 536870912
  %v422 = vshrl.u32 %v421, 30
  %v423 = vshll.u32 %v422, 30
  %v424 = vsub.s32 %v420, %v423
  %vm425 = vcmp.lt.s32.totalorder %v424, 0
  %v426 = vsub.s32 0, %v424
  %v427 = vsel %vm425, %v426, %v424
  %v428 = vclz %v427
  %v429 = vsub.s32 %v428, 2
  %vm430 = vcmp.gt.s32.totalorder 0, %v429
  %v431 = vsel %vm430, 0, %v429
  %v432 = vsub.s32 32, %v431
  %v433 = vshll.u32 %v424, %v431
  %v434 = vshrl.u32 %v416, %v432
  %v435 = vor.u32 %v433, %v434
  %v436 = vsub.s32 4294967266, %v431
  %v437 = vadd.s32 %v436, 127
  %v438 = vshll.u32 %v437, 23
  %v439 = vor.u32 4788187, %v438
  %v440 = vand.u32 2147483647, %v439
  %v442 = vcvt.s32.f32 %v435
  %v443 = vmul.f32 %v442, %v440
  %v444 = vxor.u32 %v443, 2147483648
  %v445 = vsel %vm324, %v444, %v443
  %v446 = vsub.s32 4, %v422
  %v447 = vsel %vm324, %v446, %v422
  %v448 = vsel %vm323, %v10, %v445
  %v449 = vsel %vm323, 0, %v447
  %v450 = vmul.f32 %v448, %v448
  %v451 = vmul.f32 %v450, -0.001358992
  %v452 = vadd.f32 %v451, 0.041655596
  %v453 = vmul.f32 %v450, %v452
  %v454 = vadd.f32 %v453, -0.4999988
  %v455 = vmul.f32 %v450, %v454
  %v456 = vadd.f32 1.0, %v455
  %v457 = vmul.f32 %v448, %v448
  %v458 = vmul.f32 %v457, -0.00019511016
  %v459 = vadd.f32 %v458, 0.008332121
  %v460 = vmul.f32 %v457, %v459
  %v461 = vadd.f32 %v460, -0.16666654
  %v462 = vmul.f32 %v457, %v461
  %v463 = vadd.f32 %v462, 1.0
  %v464 = vmul.f32 %v463, %v448
  %vm465 = vweird.f32 %v10
  %v466 = vadd.s32 %v449, 3
  %v467 = vand.u32 %v466, 3
  %vm468 = vcmp.lt.s32.totalorder %v467, 2
  %vm469 = vcmp.eq.s32.totalorder %v467, 0
  %v470 = vxor.u32 %v464, 2147483648
  %v471 = vsel %vm469, %v456, %v470
  %vm472 = vcmp.eq.s32.totalorder %v467, 2
  %v473 = vxor.u32 %v456, 2147483648
  %v474 = vsel %vm472, %v473, %v464
  %v475 = vsel %vm468, %v471, %v474
  %v476 = vsel %vm465, nan, %v475
  %v477 = vand.u32 2147483647, %v11
  %vm478 = vcmp.le.f32.partialorder %v477, 0.7853982
  %vm479 = vcmp.lt.s32.totalorder %v11, 0
  %v480 = vand.u32 %v11, 2139095040
  %v481 = vshrl.u32 %v480, 23
  %v482 = vsub.s32 %v481, 127
  %v483 = vand.u32 2147483647, %v11
  %v484 = vand.u32 %v483, 8388607
  %v485 = vor.u32 %v484, 8388608
  %v486 = vsub.s32 0, %v485
  %v487 = vadd.s32 %v482, 1
  %vm488 = vcmp.gt.s32.totalorder %v487, 0
  %v489 = vsel %vm488, %v487, 0
  %v490 = vshrl.u32 %v489, 5
  %v491 = vand.u32 %v489, 31
  %v492 = vsub.s32 32, %v491
  %v493 = vshrl.u32 683565275, %v492
  %v494 = vshll.u32 683565275, %v491
  %v495 = vshrl.u32 2475754826, %v492
  %v496 = vor.u32 %v494, %v495
  %v497 = vshll.u32 2475754826, %v491
  %v498 = vshrl.u32 2131351028, %v492
  %v499 = vor.u32 %v497, %v498
  %v500 = vshll.u32 2131351028, %v491
  %v501 = vshrl.u32 2102212464, %v492
  %v502 = vor.u32 %v500, %v501
  %v503 = vshll.u32 2102212464, %v491
  %v504 = vshrl.u32 920167782, %v492
  %v505 = vor.u32 %v503, %v504
  %v506 = vshll.u32 920167782, %v491
  %v507 = vshrl.u32 1326507024, %v492
  %v508 = vor.u32 %v506, %v507
  %vm509 = vcmp.lt.s32.totalorder %v490, 1
  %vm510 = vcmp.lt.s32.totalorder %v490, 2
  %vm511 = vcmp.lt.s32.totalorder %v490, 3
  %vm512 = vcmp.lt.s32.totalorder %v490, 4
  %v513 = vsel %vm509, %v493, %v496
  %v514 = vsel %vm512, %v502, 2102212464
  %v515 = vsel %vm511, %v499, %v514
  %v516 = vsel %vm510, %v513, %v515
  %v517 = vsel %vm509, %v496, %v499
  %v518 = vsel %vm512, %v505, 920167782
  %v519 = vsel %vm511, %v502, %v518
  %v520 = vsel %vm510, %v517, %v519
  %v521 = vsel %vm509, %v499, %v502
  %v522 = vsel %vm512, %v508, 1326507024
  %v523 = vsel %vm511, %v505, %v522
  %v524 = vsel %vm510, %v521, %v523
  %v525 = vshll.u32 %v485, 8
  %v526 = vand.u32 %v525, 65535
  %v527 = vshrl.u32 %v525, 16
  %v528 = vand.u32 %v524, 65535
  %v529 = vshrl.u32 %v524, 16
  %v530 = vmul.u32 %v526, %v528
  %v531 = vmul.u32 %v526, %v529
  %v532 = vmul.u32 %v527, %v528
  %v533 = vmul.u32 %v527, %v529
  %v534 = vshll.u32 %v531, 16
  %v535 = vshrl.u32 %v531, 16
  %v536 = vshll.u32 %v532, 16
  %v537 = vshrl.u32 %v532, 16
  %vm538 = vc.u32 %v530, %v534
  %v539 = vsel %vm538, 1, 0
  %v540 = vadd.s32 %v530, %v534
  %v541 = vadd.s32 %v533, %v539
  %vm542 = vc.u32 %v540, %v536
  %v543 = vsel %vm542, 1, 0
  %v544 = vadd.s32 %v540, %v536
  %v545 = vadd.s32 %v541, %v543
  %v546 = vadd.s32 %v545, %v535
  %v547 = vadd.s32 %v546, %v537
  %v548 = vand.u32 %v525, 65535
  %v549 = vshrl.u32 %v525, 16
  %v550 = vand.u32 %v520, 65535
  %v551 = vshrl.u32 %v520, 16
  %v552 = vmul.u32 %v548, %v550
  %v553 = vmul.u32 %v548, %v551
  %v554 = vmul.u32 %v549, %v550
  %v555 = vmul.u32 %v549, %v551
  %v556 = vshll.u32 %v553, 16
  %v557 = vshrl.u32 %v553, 16
  %v558 = vshll.u32 %v554, 16
  %v559 = vshrl.u32 %v554, 16
  %vm560 = vc.u32 %v552, %v556
  %v561 = vsel %vm560, 1, 0
  %v562 = vadd.s32 %v552, %v556
  %v563 = vadd.s32 %v555, %v561
  %vm564 = vc.u32 %v562, %v558
  %v565 = vsel %vm564, 1, 0
  %v566 = vadd.s32 %v562, %v558
  %v567 = vadd.s32 %v563, %v565
  %v568 = vadd.s32 %v567, %v557
  %v569 = vadd.s32 %v568, %v559
  %v570 = vmul.u32 %v525, %v516
  %v571 = vadd.s32 %v547, %v566
  %vm572 = vc.u32 %v547, %v566
  %v573 = vadd.s32 %v569, 1
  %v574 = vsel %vm572, %v573, %v569
  %v575 = vadd.s32 %v570, %v574
  %v576 = vadd.s32 %v575, 536870912
  %v577 = vshrl.u32 %v576, 30
  %v578 = vshll.u32 %v577, 30
  %v579 = vsub.s32 %v575, %v578
  %vm580 = vcmp.lt.s32.totalorder %v579, 0
  %v581 = vsub.s32 0, %v579
  %v582 = vsel %vm580, %v581, %v579
  %v583 = vclz %v582
  %v584 = vsub.s32 %v583, 2
  %vm585 = vcmp.gt.s32.totalorder 0, %v584
  %v586 = vsel %vm585, 0, %v584
  %v587 = vsub.s32 32, %v586
  %v588 = vshll.u32 %v579, %v586
  %v589 = vshrl.u32 %v571, %v587
  %v590 = vor.u32 %v588, %v589
  %v591 = vsub.s32 4294967266, %v586
  %v592 = vadd.s32 %v591, 127
  %v593 = vshll.u32 %v592, 23
  %v594 = vor.u32 4788187, %v593
  %v595 = vand.u32 2147483647, %v594
  %v597 = vcvt.s32.f32 %v590
  %v598 = vmul.f32 %v597, %v595
  %v599 = vxor.u32 %v598, 2147483648
  %v600 = vsel %vm479, %v599, %v598
  %v601 = vsub.s32 4, %v577
  %v602 = vsel %vm479, %v601, %v577
  %v603 = vsel %vm478, %v11, %v600
  %v604 = vsel %vm478, 0, %v602
  %v605 = vmul.f32 %v603, %v603
  %v606 = vmul.f32 %v605, -0.001358992
  %v607 = vadd.f32 %v606, 0.041655596
  %v608 = vmul.f32 %v605, %v607
  %v609 = vadd.f32 %v608, -0.4999988
  %v610 = vmul.f32 %v605, %v609
  %v611 = vadd.f32 1.0, %v610
  %v612 = vmul.f32 %v603, %v603
  %v613 = vmul.f32 %v612, -0.00019511016
  %v614 = vadd.f32 %v613, 0.008332121
  %v615 = vmul.f32 %v612, %v614
  %v616 = vadd.f32 %v615, -0.16666654
  %v617 = vmul.f32 %v612, %v616
  %v618 = vadd.f32 %v617, 1.0
  %v619 = vmul.f32 %v618, %v603
  %vm620 = vweird.f32 %v11
  %v621 = vadd.s32 %v604, 3
  %v622 = vand.u32 %v621, 3
  %vm623 = vcmp.lt.s32.totalorder %v622, 2
  %vm624 = vcmp.eq.s32.totalorder %v622, 0
  %v625 = vxor.u32 %v619, 2147483648
  %v626 = vsel %vm624, %v611, %v625
  %vm627 = vcmp.eq.s32.totalorder %v622, 2
  %v628 = vxor.u32 %v611, 2147483648
  %v629 = vsel %vm627, %v628, %v619
  %v630 = vsel %vm623, %v626, %v629
  %v631 = vsel %vm620, nan, %v630
  %v632 = vand.u32 2147483647, %v8
  %vm633 = vcmp.le.f32.partialorder %v632, 0.7853982
  %vm634 = vcmp.lt.s32.totalorder %v8, 0
  %v635 = vand.u32 %v8, 2139095040
  %v636 = vshrl.u32 %v635, 23
  %v637 = vsub.s32 %v636, 127
  %v638 = vand.u32 2147483647, %v8
  %v639 = vand.u32 %v638, 8388607
  %v640 = vor.u32 %v639, 8388608
  %v641 = vsub.s32 0, %v640
  %v642 = vadd.s32 %v637, 1
  %vm643 = vcmp.gt.s32.totalorder %v642, 0
  %v644 = vsel %vm643, %v642, 0
  %v645 = vshrl.u32 %v644, 5
  %v646 = vand.u32 %v644, 31
  %v647 = vsub.s32 32, %v646
  %v648 = vshrl.u32 683565275, %v647
  %v649 = vshll.u32 683565275, %v646
  %v650 = vshrl.u32 2475754826, %v647
  %v651 = vor.u32 %v649, %v650
  %v652 = vshll.u32 2475754826, %v646
  %v653 = vshrl.u32 2131351028, %v647
  %v654 = vor.u32 %v652, %v653
  %v655 = vshll.u32 2131351028, %v646
  %v656 = vshrl.u32 2102212464, %v647
  %v657 = vor.u32 %v655, %v656
  %v658 = vshll.u32 2102212464, %v646
  %v659 = vshrl.u32 920167782, %v647
  %v660 = vor.u32 %v658, %v659
  %v661 = vshll.u32 920167782, %v646
  %v662 = vshrl.u32 1326507024, %v647
  %v663 = vor.u32 %v661, %v662
  %vm664 = vcmp.lt.s32.totalorder %v645, 1
  %vm665 = vcmp.lt.s32.totalorder %v645, 2
  %vm666 = vcmp.lt.s32.totalorder %v645, 3
  %vm667 = vcmp.lt.s32.totalorder %v645, 4
  %v668 = vsel %vm664, %v648, %v651
  %v669 = vsel %vm667, %v657, 2102212464
  %v670 = vsel %vm666, %v654, %v669
  %v671 = vsel %vm665, %v668, %v670
  %v672 = vsel %vm664, %v651, %v654
  %v673 = vsel %vm667, %v660, 920167782
  %v674 = vsel %vm666, %v657, %v673
  %v675 = vsel %vm665, %v672, %v674
  %v676 = vsel %vm664, %v654, %v657
  %v677 = vsel %vm667, %v663, 1326507024
  %v678 = vsel %vm666, %v660, %v677
  %v679 = vsel %vm665, %v676, %v678
  %v680 = vshll.u32 %v640, 8
  %v681 = vand.u32 %v680, 65535
  %v682 = vshrl.u32 %v680, 16
  %v683 = vand.u32 %v679, 65535
  %v684 = vshrl.u32 %v679, 16
  %v685 = vmul.u32 %v681, %v683
  %v686 = vmul.u32 %v681, %v684
  %v687 = vmul.u32 %v682, %v683
  %v688 = vmul.u32 %v682, %v684
  %v689 = vshll.u32 %v686, 16
  %v690 = vshrl.u32 %v686, 16
  %v691 = vshll.u32 %v687, 16
  %v692 = vshrl.u32 %v687, 16
  %vm693 = vc.u32 %v685, %v689
  %v694 = vsel %vm693, 1, 0
  %v695 = vadd.s32 %v685, %v689
  %v696 = vadd.s32 %v688, %v694
  %vm697 = vc.u32 %v695, %v691
  %v698 = vsel %vm697, 1, 0
  %v699 = vadd.s32 %v695, %v691
  %v700 = vadd.s32 %v696, %v698
  %v701 = vadd.s32 %v700, %v690
  %v702 = vadd.s32 %v701, %v692
  %v703 = vand.u32 %v680, 65535
  %v704 = vshrl.u32 %v680, 16
  %v705 = vand.u32 %v675, 65535
  %v706 = vshrl.u32 %v675, 16
  %v707 = vmul.u32 %v703, %v705
  %v708 = vmul.u32 %v703, %v706
  %v709 = vmul.u32 %v704, %v705
  %v710 = vmul.u32 %v704, %v706
  %v711 = vshll.u32 %v708, 16
  %v712 = vshrl.u32 %v708, 16
  %v713 = vshll.u32 %v709, 16
  %v714 = vshrl.u32 %v709, 16
  %vm715 = vc.u32 %v707, %v711
  %v716 = vsel %vm715, 1, 0
  %v717 = vadd.s32 %v707, %v711
  %v718 = vadd.s32 %v710, %v716
  %vm719 = vc.u32 %v717, %v713
  %v720 = vsel %vm719, 1, 0
  %v721 = vadd.s32 %v717, %v713
  %v722 = vadd.s32 %v718, %v720
  %v723 = vadd.s32 %v722, %v712
  %v724 = vadd.s32 %v723, %v714
  %v725 = vmul.u32 %v680, %v671
  %v726 = vadd.s32 %v702, %v721
  %vm727 = vc.u32 %v702, %v721
  %v728 = vadd.s32 %v724, 1
  %v729 = vsel %vm727, %v728, %v724
  %v730 = vadd.s32 %v725, %v729
  %v731 = vadd.s32 %v730, 536870912
  %v732 = vshrl.u32 %v731, 30
  %v733 = vshll.u32 %v732, 30
  %v734 = vsub.s32 %v730, %v733
  %vm735 = vcmp.lt.s32.totalorder %v734, 0
  %v736 = vsub.s32 0, %v734
  %v737 = vsel %vm735, %v736, %v734
  %v738 = vclz %v737
  %v739 = vsub.s32 %v738, 2
  %vm740 = vcmp.gt.s32.totalorder 0, %v739
  %v741 = vsel %vm740, 0, %v739
  %v742 = vsub.s32 32, %v741
  %v743 = vshll.u32 %v734, %v741
  %v744 = vshrl.u32 %v726, %v742
  %v745 = vor.u32 %v743, %v744
  %v746 = vsub.s32 4294967266, %v741
  %v747 = vadd.s32 %v746, 127
  %v748 = vshll.u32 %v747, 23
  %v749 = vor.u32 4788187, %v748
  %v750 = vand.u32 2147483647, %v749
  %v752 = vcvt.s32.f32 %v745
  %v753 = vmul.f32 %v752, %v750
  %v754 = vxor.u32 %v753, 2147483648
  %v755 = vsel %vm634, %v754, %v753
  %v756 = vsub.s32 4, %v732
  %v757 = vsel %vm634, %v756, %v732
  %v758 = vsel %vm633, %v8, %v755
  %v759 = vsel %vm633, 0, %v757
  %v760 = vmul.f32 %v758, %v758
  %v761 = vmul.f32 %v760, -0.001358992
  %v762 = vadd.f32 %v761, 0.041655596
  %v763 = vmul.f32 %v760, %v762
  %v764 = vadd.f32 %v763, -0.4999988
  %v765 = vmul.f32 %v760, %v764
  %v766 = vadd.f32 1.0, %v765
  %v767 = vmul.f32 %v758, %v758
  %v768 = vmul.f32 %v767, -0.00019511016
  %v769 = vadd.f32 %v768, 0.008332121
  %v770 = vmul.f32 %v767, %v769
  %v771 = vadd.f32 %v770, -0.16666654
  %v772 = vmul.f32 %v767, %v771
  %v773 = vadd.f32 %v772, 1.0
  %v774 = vmul.f32 %v773, %v758
  %vm775 = vweird.f32 %v8
  %v776 = vand.u32 %v759, 3
  %vm777 = vcmp.lt.s32.totalorder %v776, 2
  %vm778 = vcmp.eq.s32.totalorder %v776, 0
  %v779 = vxor.u32 %v774, 2147483648
  %v780 = vsel %vm778, %v766, %v779
  %vm781 = vcmp.eq.s32.totalorder %v776, 2
  %v782 = vxor.u32 %v766, 2147483648
  %v783 = vsel %vm781, %v782, %v774
  %v784 = vsel %vm777, %v780, %v783
  %v785 = vsel %vm775, nan, %v784
  %v786 = vand.u32 2147483647, %v9
  %vm787 = vcmp.le.f32.partialorder %v786, 0.7853982
  %vm788 = vcmp.lt.s32.totalorder %v9, 0
  %v789 = vand.u32 %v9, 2139095040
  %v790 = vshrl.u32 %v789, 23
  %v791 = vsub.s32 %v790, 127
  %v792 = vand.u32 2147483647, %v9
  %v793 = vand.u32 %v792, 8388607
  %v794 = vor.u32 %v793, 8388608
  %v795 = vsub.s32 0, %v794
  %v796 = vadd.s32 %v791, 1
  %vm797 = vcmp.gt.s32.totalorder %v796, 0
  %v798 = vsel %vm797, %v796, 0
  %v799 = vshrl.u32 %v798, 5
  %v800 = vand.u32 %v798, 31
  %v801 = vsub.s32 32, %v800
  %v802 = vshrl.u32 683565275, %v801
  %v803 = vshll.u32 683565275, %v800
  %v804 = vshrl.u32 2475754826, %v801
  %v805 = vor.u32 %v803, %v804
  %v806 = vshll.u32 2475754826, %v800
  %v807 = vshrl.u32 2131351028, %v801
  %v808 = vor.u32 %v806, %v807
  %v809 = vshll.u32 2131351028, %v800
  %v810 = vshrl.u32 2102212464, %v801
  %v811 = vor.u32 %v809, %v810
  %v812 = vshll.u32 2102212464, %v800
  %v813 = vshrl.u32 920167782, %v801
  %v814 = vor.u32 %v812, %v813
  %v815 = vshll.u32 920167782, %v800
  %v816 = vshrl.u32 1326507024, %v801
  %v817 = vor.u32 %v815, %v816
  %vm818 = vcmp.lt.s32.totalorder %v799, 1
  %vm819 = vcmp.lt.s32.totalorder %v799, 2
  %vm820 = vcmp.lt.s32.totalorder %v799, 3
  %vm821 = vcmp.lt.s32.totalorder %v799, 4
  %v822 = vsel %vm818, %v802, %v805
  %v823 = vsel %vm821, %v811, 2102212464
  %v824 = vsel %vm820, %v808, %v823
  %v825 = vsel %vm819, %v822, %v824
  %v826 = vsel %vm818, %v805, %v808
  %v827 = vsel %vm821, %v814, 920167782
  %v828 = vsel %vm820, %v811, %v827
  %v829 = vsel %vm819, %v826, %v828
  %v830 = vsel %vm818, %v808, %v811
  %v831 = vsel %vm821, %v817, 1326507024
  %v832 = vsel %vm820, %v814, %v831
  %v833 = vsel %vm819, %v830, %v832
  %v834 = vshll.u32 %v794, 8
  %v835 = vand.u32 %v834, 65535
  %v836 = vshrl.u32 %v834, 16
  %v837 = vand.u32 %v833, 65535
  %v838 = vshrl.u32 %v833, 16
  %v839 = vmul.u32 %v835, %v837
  %v840 = vmul.u32 %v835, %v838
  %v841 = vmul.u32 %v836, %v837
  %v842 = vmul.u32 %v836, %v838
  %v843 = vshll.u32 %v840, 16
  %v844 = vshrl.u32 %v840, 16
  %v845 = vshll.u32 %v841, 16
  %v846 = vshrl.u32 %v841, 16
  %vm847 = vc.u32 %v839, %v843
  %v848 = vsel %vm847, 1, 0
  %v849 = vadd.s32 %v839, %v843
  %v850 = vadd.s32 %v842, %v848
  %vm851 = vc.u32 %v849, %v845
  %v852 = vsel %vm851, 1, 0
  %v853 = vadd.s32 %v849, %v845
  %v854 = vadd.s32 %v850, %v852
  %v855 = vadd.s32 %v854, %v844
  %v856 = vadd.s32 %v855, %v846
  %v857 = vand.u32 %v834, 65535
  %v858 = vshrl.u32 %v834, 16
  %v859 = vand.u32 %v829, 65535
  %v860 = vshrl.u32 %v829, 16
  %v861 = vmul.u32 %v857, %v859
  %v862 = vmul.u32 %v857, %v860
  %v863 = vmul.u32 %v858, %v859
  %v864 = vmul.u32 %v858, %v860
  %v865 = vshll.u32 %v862, 16
  %v866 = vshrl.u32 %v862, 16
  %v867 = vshll.u32 %v863, 16
  %v868 = vshrl.u32 %v863, 16
  %vm869 = vc.u32 %v861, %v865
  %v870 = vsel %vm869, 1, 0
  %v871 = vadd.s32 %v861, %v865
  %v872 = vadd.s32 %v864, %v870
  %vm873 = vc.u32 %v871, %v867
  %v874 = vsel %vm873, 1, 0
  %v875 = vadd.s32 %v871, %v867
  %v876 = vadd.s32 %v872, %v874
  %v877 = vadd.s32 %v876, %v866
  %v878 = vadd.s32 %v877, %v868
  %v879 = vmul.u32 %v834, %v825
  %v880 = vadd.s32 %v856, %v875
  %vm881 = vc.u32 %v856, %v875
  %v882 = vadd.s32 %v878, 1
  %v883 = vsel %vm881, %v882, %v878
  %v884 = vadd.s32 %v879, %v883
  %v885 = vadd.s32 %v884, 536870912
  %v886 = vshrl.u32 %v885, 30
  %v887 = vshll.u32 %v886, 30
  %v888 = vsub.s32 %v884, %v887
  %vm889 = vcmp.lt.s32.totalorder %v888, 0
  %v890 = vsub.s32 0, %v888
  %v891 = vsel %vm889, %v890, %v888
  %v892 = vclz %v891
  %v893 = vsub.s32 %v892, 2
  %vm894 = vcmp.gt.s32.totalorder 0, %v893
  %v895 = vsel %vm894, 0, %v893
  %v896 = vsub.s32 32, %v895
  %v897 = vshll.u32 %v888, %v895
  %v898 = vshrl.u32 %v880, %v896
  %v899 = vor.u32 %v897, %v898
  %v900 = vsub.s32 4294967266, %v895
  %v901 = vadd.s32 %v900, 127
  %v902 = vshll.u32 %v901, 23
  %v903 = vor.u32 4788187, %v902
  %v904 = vand.u32 2147483647, %v903
  %v906 = vcvt.s32.f32 %v899
  %v907 = vmul.f32 %v906, %v904
  %v908 = vxor.u32 %v907, 2147483648
  %v909 = vsel %vm788, %v908, %v907
  %v910 = vsub.s32 4, %v886
  %v911 = vsel %vm788, %v910, %v886
  %v912 = vsel %vm787, %v9, %v909
  %v913 = vsel %vm787, 0, %v911
  %v914 = vmul.f32 %v912, %v912
  %v915 = vmul.f32 %v914, -0.001358992
  %v916 = vadd.f32 %v915, 0.041655596
  %v917 = vmul.f32 %v914, %v916
  %v918 = vadd.f32 %v917, -0.4999988
  %v919 = vmul.f32 %v914, %v918
  %v920 = vadd.f32 1.0, %v919
  %v921 = vmul.f32 %v912, %v912
  %v922 = vmul.f32 %v921, -0.00019511016
  %v923 = vadd.f32 %v922, 0.008332121
  %v924 = vmul.f32 %v921, %v923
  %v925 = vadd.f32 %v924, -0.16666654
  %v926 = vmul.f32 %v921, %v925
  %v927 = vadd.f32 %v926, 1.0
  %v928 = vmul.f32 %v927, %v912
  %vm929 = vweird.f32 %v9
  %v930 = vand.u32 %v913, 3
  %vm931 = vcmp.lt.s32.totalorder %v930, 2
  %vm932 = vcmp.eq.s32.totalorder %v930, 0
  %v933 = vxor.u32 %v928, 2147483648
  %v934 = vsel %vm932, %v920, %v933
  %vm935 = vcmp.eq.s32.totalorder %v930, 2
  %v936 = vxor.u32 %v920, 2147483648
  %v937 = vsel %vm935, %v936, %v928
  %v938 = vsel %vm931, %v934, %v937
  %v939 = vsel %vm929, nan, %v938
  %v940 = vand.u32 2147483647, %v10
  %vm941 = vcmp.le.f32.partialorder %v940, 0.7853982
  %vm942 = vcmp.lt.s32.totalorder %v10, 0
  %v943 = vand.u32 %v10, 2139095040
  %v944 = vshrl.u32 %v943, 23
  %v945 = vsub.s32 %v944, 127
  %v946 = vand.u32 2147483647, %v10
  %v947 = vand.u32 %v946, 8388607
  %v948 = vor.u32 %v947, 8388608
  %v949 = vsub.s32 0, %v948
  %v950 = vadd.s32 %v945, 1
  %vm951 = vcmp.gt.s32.totalorder %v950, 0
  %v952 = vsel %vm951, %v950, 0
  %v953 = vshrl.u32 %v952, 5
  %v954 = vand.u32 %v952, 31
  %v955 = vsub.s32 32, %v954
  %v956 = vshrl.u32 683565275, %v955
  %v957 = vshll.u32 683565275, %v954
  %v958 = vshrl.u32 2475754826, %v955
  %v959 = vor.u32 %v957, %v958
  %v960 = vshll.u32 2475754826, %v954
  %v961 = vshrl.u32 2131351028, %v955
  %v962 = vor.u32 %v960, %v961
  %v963 = vshll.u32 2131351028, %v954
  %v964 = vshrl.u32 2102212464, %v955
  %v965 = vor.u32 %v963, %v964
  %v966 = vshll.u32 2102212464, %v954
  %v967 = vshrl.u32 920167782, %v955
  %v968 = vor.u32 %v966, %v967
  %v969 = vshll.u32 920167782, %v954
  %v970 = vshrl.u32 1326507024, %v955
  %v971 = vor.u32 %v969, %v970
  %vm972 = vcmp.lt.s32.totalorder %v953, 1
  %vm973 = vcmp.lt.s32.totalorder %v953, 2
  %vm974 = vcmp.lt.s32.totalorder %v953, 3
  %vm975 = vcmp.lt.s32.totalorder %v953, 4
  %v976 = vsel %vm972, %v956, %v959
  %v977 = vsel %vm975, %v965, 2102212464
  %v978 = vsel %vm974, %v962, %v977
  %v979 = vsel %vm973, %v976, %v978
  %v980 = vsel %vm972, %v959, %v962
  %v981 = vsel %vm975, %v968, 920167782
  %v982 = vsel %vm974, %v965, %v981
  %v983 = vsel %vm973, %v980, %v982
  %v984 = vsel %vm972, %v962, %v965
  %v985 = vsel %vm975, %v971, 1326507024
  %v986 = vsel %vm974, %v968, %v985
  %v987 = vsel %vm973, %v984, %v986
  %v988 = vshll.u32 %v948, 8
  %v989 = vand.u32 %v988, 65535
  %v990 = vshrl.u32 %v988, 16
  %v991 = vand.u32 %v987, 65535
  %v992 = vshrl.u32 %v987, 16
  %v993 = vmul.u32 %v989, %v991
  %v994 = vmul.u32 %v989, %v992
  %v995 = vmul.u32 %v990, %v991
  %v996 = vmul.u32 %v990, %v992
  %v997 = vshll.u32 %v994, 16
  %v998 = vshrl.u32 %v994, 16
  %v999 = vshll.u32 %v995, 16
  %v1000 = vshrl.u32 %v995, 16
  %vm1001 = vc.u32 %v993, %v997
  %v1002 = vsel %vm1001, 1, 0
  %v1003 = vadd.s32 %v993, %v997
  %v1004 = vadd.s32 %v996, %v1002
  %vm1005 = vc.u32 %v1003, %v999
  %v1006 = vsel %vm1005, 1, 0
  %v1007 = vadd.s32 %v1003, %v999
  %v1008 = vadd.s32 %v1004, %v1006
  %v1009 = vadd.s32 %v1008, %v998
  %v1010 = vadd.s32 %v1009, %v1000
  %v1011 = vand.u32 %v988, 65535
  %v1012 = vshrl.u32 %v988, 16
  %v1013 = vand.u32 %v983, 65535
  %v1014 = vshrl.u32 %v983, 16
  %v1015 = vmul.u32 %v1011, %v1013
  %v1016 = vmul.u32 %v1011, %v1014
  %v1017 = vmul.u32 %v1012, %v1013
  %v1018 = vmul.u32 %v1012, %v1014
  %v1019 = vshll.u32 %v1016, 16
  %v1020 = vshrl.u32 %v1016, 16
  %v1021 = vshll.u32 %v1017, 16
  %v1022 = vshrl.u32 %v1017, 16
  %vm1023 = vc.u32 %v1015, %v1019
  %v1024 = vsel %vm1023, 1, 0
  %v1025 = vadd.s32 %v1015, %v1019
  %v1026 = vadd.s32 %v1018, %v1024
  %vm1027 = vc.u32 %v1025, %v1021
  %v1028 = vsel %vm1027, 1, 0
  %v1029 = vadd.s32 %v1025, %v1021
  %v1030 = vadd.s32 %v1026, %v1028
  %v1031 = vadd.s32 %v1030, %v1020
  %v1032 = vadd.s32 %v1031, %v1022
  %v1033 = vmul.u32 %v988, %v979
  %v1034 = vadd.s32 %v1010, %v1029
  %vm1035 = vc.u32 %v1010, %v1029
  %v1036 = vadd.s32 %v1032, 1
  %v1037 = vsel %vm1035, %v1036, %v1032
  %v1038 = vadd.s32 %v1033, %v1037
  %v1039 = vadd.s32 %v1038, 536870912
  %v1040 = vshrl.u32 %v1039, 30
  %v1041 = vshll.u32 %v1040, 30
  %v1042 = vsub.s32 %v1038, %v1041
  %vm1043 = vcmp.lt.s32.totalorder %v1042, 0
  %v1044 = vsub.s32 0, %v1042
  %v1045 = vsel %vm1043, %v1044, %v1042
  %v1046 = vclz %v1045
  %v1047 = vsub.s32 %v1046, 2
  %vm1048 = vcmp.gt.s32.totalorder 0, %v1047
  %v1049 = vsel %vm1048, 0, %v1047
  %v1050 = vsub.s32 32, %v1049
  %v1051 = vshll.u32 %v1042, %v1049
  %v1052 = vshrl.u32 %v1034, %v1050
  %v1053 = vor.u32 %v1051, %v1052
  %v1054 = vsub.s32 4294967266, %v1049
  %v1055 = vadd.s32 %v1054, 127
  %v1056 = vshll.u32 %v1055, 23
  %v1057 = vor.u32 4788187, %v1056
  %v1058 = vand.u32 2147483647, %v1057
  %v1060 = vcvt.s32.f32 %v1053
  %v1061 = vmul.f32 %v1060, %v1058
  %v1062 = vxor.u32 %v1061, 2147483648
  %v1063 = vsel %vm942, %v1062, %v1061
  %v1064 = vsub.s32 4, %v1040
  %v1065 = vsel %vm942, %v1064, %v1040
  %v1066 = vsel %vm941, %v10, %v1063
  %v1067 = vsel %vm941, 0, %v1065
  %v1068 = vmul.f32 %v1066, %v1066
  %v1069 = vmul.f32 %v1068, -0.001358992
  %v1070 = vadd.f32 %v1069, 0.041655596
  %v1071 = vmul.f32 %v1068, %v1070
  %v1072 = vadd.f32 %v1071, -0.4999988
  %v1073 = vmul.f32 %v1068, %v1072
  %v1074 = vadd.f32 1.0, %v1073
  %v1075 = vmul.f32 %v1066, %v1066
  %v1076 = vmul.f32 %v1075, -0.00019511016
  %v1077 = vadd.f32 %v1076, 0.008332121
  %v1078 = vmul.f32 %v1075, %v1077
  %v1079 = vadd.f32 %v1078, -0.16666654
  %v1080 = vmul.f32 %v1075, %v1079
  %v1081 = vadd.f32 %v1080, 1.0
  %v1082 = vmul.f32 %v1081, %v1066
  %vm1083 = vweird.f32 %v10
  %v1084 = vand.u32 %v1067, 3
  %vm1085 = vcmp.lt.s32.totalorder %v1084, 2
  %vm1086 = vcmp.eq.s32.totalorder %v1084, 0
  %v1087 = vxor.u32 %v1082, 2147483648
  %v1088 = vsel %vm1086, %v1074, %v1087
  %vm1089 = vcmp.eq.s32.totalorder %v1084, 2
  %v1090 = vxor.u32 %v1074, 2147483648
  %v1091 = vsel %vm1089, %v1090, %v1082
  %v1092 = vsel %vm1085, %v1088, %v1091
  %v1093 = vsel %vm1083, nan, %v1092
  %v1094 = vand.u32 2147483647, %v11
  %vm1095 = vcmp.le.f32.partialorder %v1094, 0.7853982
  %vm1096 = vcmp.lt.s32.totalorder %v11, 0
  %v1097 = vand.u32 %v11, 2139095040
  %v1098 = vshrl.u32 %v1097, 23
  %v1099 = vsub.s32 %v1098, 127
  %v1100 = vand.u32 2147483647, %v11
  %v1101 = vand.u32 %v1100, 8388607
  %v1102 = vor.u32 %v1101, 8388608
  %v1103 = vsub.s32 0, %v1102
  %v1104 = vadd.s32 %v1099, 1
  %vm1105 = vcmp.gt.s32.totalorder %v1104, 0
  %v1106 = vsel %vm1105, %v1104, 0
  %v1107 = vshrl.u32 %v1106, 5
  %v1108 = vand.u32 %v1106, 31
  %v1109 = vsub.s32 32, %v1108
  %v1110 = vshrl.u32 683565275, %v1109
  %v1111 = vshll.u32 683565275, %v1108
  %v1112 = vshrl.u32 2475754826, %v1109
  %v1113 = vor.u32 %v1111, %v1112
  %v1114 = vshll.u32 2475754826, %v1108
  %v1115 = vshrl.u32 2131351028, %v1109
  %v1116 = vor.u32 %v1114, %v1115
  %v1117 = vshll.u32 2131351028, %v1108
  %v1118 = vshrl.u32 2102212464, %v1109
  %v1119 = vor.u32 %v1117, %v1118
  %v1120 = vshll.u32 2102212464, %v1108
  %v1121 = vshrl.u32 920167782, %v1109
  %v1122 = vor.u32 %v1120, %v1121
  %v1123 = vshll.u32 920167782, %v1108
  %v1124 = vshrl.u32 1326507024, %v1109
  %v1125 = vor.u32 %v1123, %v1124
  %vm1126 = vcmp.lt.s32.totalorder %v1107, 1
  %vm1127 = vcmp.lt.s32.totalorder %v1107, 2
  %vm1128 = vcmp.lt.s32.totalorder %v1107, 3
  %vm1129 = vcmp.lt.s32.totalorder %v1107, 4
  %v1130 = vsel %vm1126, %v1110, %v1113
  %v1131 = vsel %vm1129, %v1119, 2102212464
  %v1132 = vsel %vm1128, %v1116, %v1131
  %v1133 = vsel %vm1127, %v1130, %v1132
  %v1134 = vsel %vm1126, %v1113, %v1116
  %v1135 = vsel %vm1129, %v1122, 920167782
  %v1136 = vsel %vm1128, %v1119, %v1135
  %v1137 = vsel %vm1127, %v1134, %v1136
  %v1138 = vsel %vm1126, %v1116, %v1119
  %v1139 = vsel %vm1129, %v1125, 1326507024
  %v1140 = vsel %vm1128, %v1122, %v1139
  %v1141 = vsel %vm1127, %v1138, %v1140
  %v1142 = vshll.u32 %v1102, 8
  %v1143 = vand.u32 %v1142, 65535
  %v1144 = vshrl.u32 %v1142, 16
  %v1145 = vand.u32 %v1141, 65535
  %v1146 = vshrl.u32 %v1141, 16
  %v1147 = vmul.u32 %v1143, %v1145
  %v1148 = vmul.u32 %v1143, %v1146
  %v1149 = vmul.u32 %v1144, %v1145
  %v1150 = vmul.u32 %v1144, %v1146
  %v1151 = vshll.u32 %v1148, 16
  %v1152 = vshrl.u32 %v1148, 16
  %v1153 = vshll.u32 %v1149, 16
  %v1154 = vshrl.u32 %v1149, 16
  %vm1155 = vc.u32 %v1147, %v1151
  %v1156 = vsel %vm1155, 1, 0
  %v1157 = vadd.s32 %v1147, %v1151
  %v1158 = vadd.s32 %v1150, %v1156
  %vm1159 = vc.u32 %v1157, %v1153
  %v1160 = vsel %vm1159, 1, 0
  %v1161 = vadd.s32 %v1157, %v1153
  %v1162 = vadd.s32 %v1158, %v1160
  %v1163 = vadd.s32 %v1162, %v1152
  %v1164 = vadd.s32 %v1163, %v1154
  %v1165 = vand.u32 %v1142, 65535
  %v1166 = vshrl.u32 %v1142, 16
  %v1167 = vand.u32 %v1137, 65535
  %v1168 = vshrl.u32 %v1137, 16
  %v1169 = vmul.u32 %v1165, %v1167
  %v1170 = vmul.u32 %v1165, %v1168
  %v1171 = vmul.u32 %v1166, %v1167
  %v1172 = vmul.u32 %v1166, %v1168
  %v1173 = vshll.u32 %v1170, 16
  %v1174 = vshrl.u32 %v1170, 16
  %v1175 = vshll.u32 %v1171, 16
  %v1176 = vshrl.u32 %v1171, 16
  %vm1177 = vc.u32 %v1169, %v1173
  %v1178 = vsel %vm1177, 1, 0
  %v1179 = vadd.s32 %v1169, %v1173
  %v1180 = vadd.s32 %v1172, %v1178
  %vm1181 = vc.u32 %v1179, %v1175
  %v1182 = vsel %vm1181, 1, 0
  %v1183 = vadd.s32 %v1179, %v1175
  %v1184 = vadd.s32 %v1180, %v1182
  %v1185 = vadd.s32 %v1184, %v1174
  %v1186 = vadd.s32 %v1185, %v1176
  %v1187 = vmul.u32 %v1142, %v1133
  %v1188 = vadd.s32 %v1164, %v1183
  %vm1189 = vc.u32 %v1164, %v1183
  %v1190 = vadd.s32 %v1186, 1
  %v1191 = vsel %vm1189, %v1190, %v1186
  %v1192 = vadd.s32 %v1187, %v1191
  %v1193 = vadd.s32 %v1192, 536870912
  %v1194 = vshrl.u32 %v1193, 30
  %v1195 = vshll.u32 %v1194, 30
  %v1196 = vsub.s32 %v1192, %v1195
  %vm1197 = vcmp.lt.s32.totalorder %v1196, 0
  %v1198 = vsub.s32 0, %v1196
  %v1199 = vsel %vm1197, %v1198, %v1196
  %v1200 = vclz %v1199
  %v1201 = vsub.s32 %v1200, 2
  %vm1202 = vcmp.gt.s32.totalorder 0, %v1201
  %v1203 = vsel %vm1202, 0, %v1201
  %v1204 = vsub.s32 32, %v1203
  %v1205 = vshll.u32 %v1196, %v1203
  %v1206 = vshrl.u32 %v1188, %v1204
  %v1207 = vor.u32 %v1205, %v1206
  %v1208 = vsub.s32 4294967266, %v1203
  %v1209 = vadd.s32 %v1208, 127
  %v1210 = vshll.u32 %v1209, 23
  %v1211 = vor.u32 4788187, %v1210
  %v1212 = vand.u32 2147483647, %v1211
  %v1214 = vcvt.s32.f32 %v1207
  %v1215 = vmul.f32 %v1214, %v1212
  %v1216 = vxor.u32 %v1215, 2147483648
  %v1217 = vsel %vm1096, %v1216, %v1215
  %v1218 = vsub.s32 4, %v1194
  %v1219 = vsel %vm1096, %v1218, %v1194
  %v1220 = vsel %vm1095, %v11, %v1217
  %v1221 = vsel %vm1095, 0, %v1219
  %v1222 = vmul.f32 %v1220, %v1220
  %v1223 = vmul.f32 %v1222, -0.001358992
  %v1224 = vadd.f32 %v1223, 0.041655596
  %v1225 = vmul.f32 %v1222, %v1224
  %v1226 = vadd.f32 %v1225, -0.4999988
  %v1227 = vmul.f32 %v1222, %v1226
  %v1228 = vadd.f32 1.0, %v1227
  %v1229 = vmul.f32 %v1220, %v1220
  %v1230 = vmul.f32 %v1229, -0.00019511016
  %v1231 = vadd.f32 %v1230, 0.008332121
  %v1232 = vmul.f32 %v1229, %v1231
  %v1233 = vadd.f32 %v1232, -0.16666654
  %v1234 = vmul.f32 %v1229, %v1233
  %v1235 = vadd.f32 %v1234, 1.0
  %v1236 = vmul.f32 %v1235, %v1220
  %vm1237 = vweird.f32 %v11
  %v1238 = vand.u32 %v1221, 3
  %vm1239 = vcmp.lt.s32.totalorder %v1238, 2
  %vm1240 = vcmp.eq.s32.totalorder %v1238, 0
  %v1241 = vxor.u32 %v1236, 2147483648
  %v1242 = vsel %vm1240, %v1228, %v1241
  %vm1243 = vcmp.eq.s32.totalorder %v1238, 2
  %v1244 = vxor.u32 %v1228, 2147483648
  %v1245 = vsel %vm1243, %v1244, %v1236
  %v1246 = vsel %vm1239, %v1242, %v1245
  %v1247 = vsel %vm1237, nan, %v1246
  %1248 = vst [vmem:[%s1] sm:$0xff] %v166
  %1249 = vst [vmem:[%s1 + $0x8] sm:$0xff] %v321
  %1250 = vst [vmem:[%s1 + $0x10] sm:$0xff] %v476
  %1251 = vst [vmem:[%s1 + $0x18] sm:$0xff] %v631
  %s1252 = scalar_lea.vmem %s1, 32
  %1253 = vst [vmem:[%s1252] sm:$0xff] %v785
  %1254 = vst [vmem:[%s1252 + $0x8] sm:$0xff] %v939
  %1255 = vst [vmem:[%s1252 + $0x10] sm:$0xff] %v1093
  %1256 = vst [vmem:[%s1252 + $0x18] sm:$0xff] %v1247
  %v1257 = vmul.f32 %v166, 2.0
  %v1258 = vmul.f32 %v321, 2.0
  %v1259 = vmul.f32 %v476, 2.0
  %v1260 = vmul.f32 %v631, 2.0
  %v1261 = vmul.f32 %v1257, %v785
  %v1262 = vmul.f32 %v1258, %v939
  %v1263 = vmul.f32 %v1259, %v1093
  %v1264 = vmul.f32 %v1260, %v1247
  %v1265 = vmul.f32 %v785, 2.0
  %v1266 = vmul.f32 %v939, 2.0
  %v1267 = vmul.f32 %v1093, 2.0
  %v1268 = vmul.f32 %v1247, 2.0
  %v1269 = vmul.f32 %v1265, %v785
  %v1270 = vmul.f32 %v1266, %v939
  %v1271 = vmul.f32 %v1267, %v1093
  %v1272 = vmul.f32 %v1268, %v1247
  %v1273 = vsub.f32 %v1269, 1.0
  %v1274 = vsub.f32 %v1270, 1.0
  %v1275 = vsub.f32 %v1271, 1.0
  %v1276 = vsub.f32 %v1272, 1.0
  %s1277 = scalar_lea.vmem %s1, 64
  %1278 = vst [vmem:[%s1277] sm:$0xff] %v1261
  %1279 = vst [vmem:[%s1277 + $0x8] sm:$0xff] %v1262
  %1280 = vst [vmem:[%s1277 + $0x10] sm:$0xff] %v1263
  %1281 = vst [vmem:[%s1277 + $0x18] sm:$0xff] %v1264
  %s1282 = scalar_lea.vmem %s1, 96
  %1283 = vst [vmem:[%s1282] sm:$0xff] %v1273
  %1284 = vst [vmem:[%s1282 + $0x8] sm:$0xff] %v1274
  %1285 = vst [vmem:[%s1282 + $0x10] sm:$0xff] %v1275
  %1286 = vst [vmem:[%s1282 + $0x18] sm:$0xff] %v1276
  %v1287 = vmul.f32 %v8, 4.0
  %v1288 = vmul.f32 %v9, 4.0
  %v1289 = vmul.f32 %v10, 4.0
  %v1290 = vmul.f32 %v11, 4.0
  %v1291 = vand.u32 2147483647, %v1287
  %vm1292 = vcmp.le.f32.partialorder %v1291, 0.7853982
  %vm1293 = vcmp.lt.s32.totalorder %v1287, 0
  %v1294 = vand.u32 %v1287, 2139095040
  %v1295 = vshrl.u32 %v1294, 23
  %v1296 = vsub.s32 %v1295, 127
  %v1297 = vand.u32 2147483647, %v1287
  %v1298 = vand.u32 %v1297, 8388607
  %v1299 = vor.u32 %v1298, 8388608
  %v1300 = vsub.s32 0, %v1299
  %v1301 = vadd.s32 %v1296, 1
  %vm1302 = vcmp.gt.s32.totalorder %v1301, 0
  %v1303 = vsel %vm1302, %v1301, 0
  %v1304 = vshrl.u32 %v1303, 5
  %v1305 = vand.u32 %v1303, 31
  %v1306 = vsub.s32 32, %v1305
  %v1307 = vshrl.u32 683565275, %v1306
  %v1308 = vshll.u32 683565275, %v1305
  %v1309 = vshrl.u32 2475754826, %v1306
  %v1310 = vor.u32 %v1308, %v1309
  %v1311 = vshll.u32 2475754826, %v1305
  %v1312 = vshrl.u32 2131351028, %v1306
  %v1313 = vor.u32 %v1311, %v1312
  %v1314 = vshll.u32 2131351028, %v1305
  %v1315 = vshrl.u32 2102212464, %v1306
  %v1316 = vor.u32 %v1314, %v1315
  %v1317 = vshll.u32 2102212464, %v1305
  %v1318 = vshrl.u32 920167782, %v1306
  %v1319 = vor.u32 %v1317, %v1318
  %v1320 = vshll.u32 920167782, %v1305
  %v1321 = vshrl.u32 1326507024, %v1306
  %v1322 = vor.u32 %v1320, %v1321
  %vm1323 = vcmp.lt.s32.totalorder %v1304, 1
  %vm1324 = vcmp.lt.s32.totalorder %v1304, 2
  %vm1325 = vcmp.lt.s32.totalorder %v1304, 3
  %vm1326 = vcmp.lt.s32.totalorder %v1304, 4
  %v1327 = vsel %vm1323, %v1307, %v1310
  %v1328 = vsel %vm1326, %v1316, 2102212464
  %v1329 = vsel %vm1325, %v1313, %v1328
  %v1330 = vsel %vm1324, %v1327, %v1329
  %v1331 = vsel %vm1323, %v1310, %v1313
  %v1332 = vsel %vm1326, %v1319, 920167782
  %v1333 = vsel %vm1325, %v1316, %v1332
  %v1334 = vsel %vm1324, %v1331, %v1333
  %v1335 = vsel %vm1323, %v1313, %v1316
  %v1336 = vsel %vm1326, %v1322, 1326507024
  %v1337 = vsel %vm1325, %v1319, %v1336
  %v1338 = vsel %vm1324, %v1335, %v1337
  %v1339 = vshll.u32 %v1299, 8
  %v1340 = vand.u32 %v1339, 65535
  %v1341 = vshrl.u32 %v1339, 16
  %v1342 = vand.u32 %v1338, 65535
  %v1343 = vshrl.u32 %v1338, 16
  %v1344 = vmul.u32 %v1340, %v1342
  %v1345 = vmul.u32 %v1340, %v1343
  %v1346 = vmul.u32 %v1341, %v1342
  %v1347 = vmul.u32 %v1341, %v1343
  %v1348 = vshll.u32 %v1345, 16
  %v1349 = vshrl.u32 %v1345, 16
  %v1350 = vshll.u32 %v1346, 16
  %v1351 = vshrl.u32 %v1346, 16
  %vm1352 = vc.u32 %v1344, %v1348
  %v1353 = vsel %vm1352, 1, 0
  %v1354 = vadd.s32 %v1344, %v1348
  %v1355 = vadd.s32 %v1347, %v1353
  %vm1356 = vc.u32 %v1354, %v1350
  %v1357 = vsel %vm1356, 1, 0
  %v1358 = vadd.s32 %v1354, %v1350
  %v1359 = vadd.s32 %v1355, %v1357
  %v1360 = vadd.s32 %v1359, %v1349
  %v1361 = vadd.s32 %v1360, %v1351
  %v1362 = vand.u32 %v1339, 65535
  %v1363 = vshrl.u32 %v1339, 16
  %v1364 = vand.u32 %v1334, 65535
  %v1365 = vshrl.u32 %v1334, 16
  %v1366 = vmul.u32 %v1362, %v1364
  %v1367 = vmul.u32 %v1362, %v1365
  %v1368 = vmul.u32 %v1363, %v1364
  %v1369 = vmul.u32 %v1363, %v1365
  %v1370 = vshll.u32 %v1367, 16
  %v1371 = vshrl.u32 %v1367, 16
  %v1372 = vshll.u32 %v1368, 16
  %v1373 = vshrl.u32 %v1368, 16
  %vm1374 = vc.u32 %v1366, %v1370
  %v1375 = vsel %vm1374, 1, 0
  %v1376 = vadd.s32 %v1366, %v1370
  %v1377 = vadd.s32 %v1369, %v1375
  %vm1378 = vc.u32 %v1376, %v1372
  %v1379 = vsel %vm1378, 1, 0
  %v1380 = vadd.s32 %v1376, %v1372
  %v1381 = vadd.s32 %v1377, %v1379
  %v1382 = vadd.s32 %v1381, %v1371
  %v1383 = vadd.s32 %v1382, %v1373
  %v1384 = vmul.u32 %v1339, %v1330
  %v1385 = vadd.s32 %v1361, %v1380
  %vm1386 = vc.u32 %v1361, %v1380
  %v1387 = vadd.s32 %v1383, 1
  %v1388 = vsel %vm1386, %v1387, %v1383
  %v1389 = vadd.s32 %v1384, %v1388
  %v1390 = vadd.s32 %v1389, 536870912
  %v1391 = vshrl.u32 %v1390, 30
  %v1392 = vshll.u32 %v1391, 30
  %v1393 = vsub.s32 %v1389, %v1392
  %vm1394 = vcmp.lt.s32.totalorder %v1393, 0
  %v1395 = vsub.s32 0, %v1393
  %v1396 = vsel %vm1394, %v1395, %v1393
  %v1397 = vclz %v1396
  %v1398 = vsub.s32 %v1397, 2
  %vm1399 = vcmp.gt.s32.totalorder 0, %v1398
  %v1400 = vsel %vm1399, 0, %v1398
  %v1401 = vsub.s32 32, %v1400
  %v1402 = vshll.u32 %v1393, %v1400
  %v1403 = vshrl.u32 %v1385, %v1401
  %v1404 = vor.u32 %v1402, %v1403
  %v1405 = vsub.s32 4294967266, %v1400
  %v1406 = vadd.s32 %v1405, 127
  %v1407 = vshll.u32 %v1406, 23
  %v1408 = vor.u32 4788187, %v1407
  %v1409 = vand.u32 2147483647, %v1408
  %v1411 = vcvt.s32.f32 %v1404
  %v1412 = vmul.f32 %v1411, %v1409
  %v1413 = vxor.u32 %v1412, 2147483648
  %v1414 = vsel %vm1293, %v1413, %v1412
  %v1415 = vsub.s32 4, %v1391
  %v1416 = vsel %vm1293, %v1415, %v1391
  %v1417 = vsel %vm1292, %v1287, %v1414
  %v1418 = vsel %vm1292, 0, %v1416
  %v1419 = vmul.f32 %v1417, %v1417
  %v1420 = vmul.f32 %v1419, -0.001358992
  %v1421 = vadd.f32 %v1420, 0.041655596
  %v1422 = vmul.f32 %v1419, %v1421
  %v1423 = vadd.f32 %v1422, -0.4999988
  %v1424 = vmul.f32 %v1419, %v1423
  %v1425 = vadd.f32 1.0, %v1424
  %v1426 = vmul.f32 %v1417, %v1417
  %v1427 = vmul.f32 %v1426, -0.00019511016
  %v1428 = vadd.f32 %v1427, 0.008332121
  %v1429 = vmul.f32 %v1426, %v1428
  %v1430 = vadd.f32 %v1429, -0.16666654
  %v1431 = vmul.f32 %v1426, %v1430
  %v1432 = vadd.f32 %v1431, 1.0
  %v1433 = vmul.f32 %v1432, %v1417
  %vm1434 = vweird.f32 %v1287
  %v1435 = vadd.s32 %v1418, 3
  %v1436 = vand.u32 %v1435, 3
  %vm1437 = vcmp.lt.s32.totalorder %v1436, 2
  %vm1438 = vcmp.eq.s32.totalorder %v1436, 0
  %v1439 = vxor.u32 %v1433, 2147483648
  %v1440 = vsel %vm1438, %v1425, %v1439
  %vm1441 = vcmp.eq.s32.totalorder %v1436, 2
  %v1442 = vxor.u32 %v1425, 2147483648
  %v1443 = vsel %vm1441, %v1442, %v1433
  %v1444 = vsel %vm1437, %v1440, %v1443
  %v1445 = vsel %vm1434, nan, %v1444
  %v1446 = vand.u32 2147483647, %v1288
  %vm1447 = vcmp.le.f32.partialorder %v1446, 0.7853982
  %vm1448 = vcmp.lt.s32.totalorder %v1288, 0
  %v1449 = vand.u32 %v1288, 2139095040
  %v1450 = vshrl.u32 %v1449, 23
  %v1451 = vsub.s32 %v1450, 127
  %v1452 = vand.u32 2147483647, %v1288
  %v1453 = vand.u32 %v1452, 8388607
  %v1454 = vor.u32 %v1453, 8388608
  %v1455 = vsub.s32 0, %v1454
  %v1456 = vadd.s32 %v1451, 1
  %vm1457 = vcmp.gt.s32.totalorder %v1456, 0
  %v1458 = vsel %vm1457, %v1456, 0
  %v1459 = vshrl.u32 %v1458, 5
  %v1460 = vand.u32 %v1458, 31
  %v1461 = vsub.s32 32, %v1460
  %v1462 = vshrl.u32 683565275, %v1461
  %v1463 = vshll.u32 683565275, %v1460
  %v1464 = vshrl.u32 2475754826, %v1461
  %v1465 = vor.u32 %v1463, %v1464
  %v1466 = vshll.u32 2475754826, %v1460
  %v1467 = vshrl.u32 2131351028, %v1461
  %v1468 = vor.u32 %v1466, %v1467
  %v1469 = vshll.u32 2131351028, %v1460
  %v1470 = vshrl.u32 2102212464, %v1461
  %v1471 = vor.u32 %v1469, %v1470
  %v1472 = vshll.u32 2102212464, %v1460
  %v1473 = vshrl.u32 920167782, %v1461
  %v1474 = vor.u32 %v1472, %v1473
  %v1475 = vshll.u32 920167782, %v1460
  %v1476 = vshrl.u32 1326507024, %v1461
  %v1477 = vor.u32 %v1475, %v1476
  %vm1478 = vcmp.lt.s32.totalorder %v1459, 1
  %vm1479 = vcmp.lt.s32.totalorder %v1459, 2
  %vm1480 = vcmp.lt.s32.totalorder %v1459, 3
  %vm1481 = vcmp.lt.s32.totalorder %v1459, 4
  %v1482 = vsel %vm1478, %v1462, %v1465
  %v1483 = vsel %vm1481, %v1471, 2102212464
  %v1484 = vsel %vm1480, %v1468, %v1483
  %v1485 = vsel %vm1479, %v1482, %v1484
  %v1486 = vsel %vm1478, %v1465, %v1468
  %v1487 = vsel %vm1481, %v1474, 920167782
  %v1488 = vsel %vm1480, %v1471, %v1487
  %v1489 = vsel %vm1479, %v1486, %v1488
  %v1490 = vsel %vm1478, %v1468, %v1471
  %v1491 = vsel %vm1481, %v1477, 1326507024
  %v1492 = vsel %vm1480, %v1474, %v1491
  %v1493 = vsel %vm1479, %v1490, %v1492
  %v1494 = vshll.u32 %v1454, 8
  %v1495 = vand.u32 %v1494, 65535
  %v1496 = vshrl.u32 %v1494, 16
  %v1497 = vand.u32 %v1493, 65535
  %v1498 = vshrl.u32 %v1493, 16
  %v1499 = vmul.u32 %v1495, %v1497
  %v1500 = vmul.u32 %v1495, %v1498
  %v1501 = vmul.u32 %v1496, %v1497
  %v1502 = vmul.u32 %v1496, %v1498
  %v1503 = vshll.u32 %v1500, 16
  %v1504 = vshrl.u32 %v1500, 16
  %v1505 = vshll.u32 %v1501, 16
  %v1506 = vshrl.u32 %v1501, 16
  %vm1507 = vc.u32 %v1499, %v1503
  %v1508 = vsel %vm1507, 1, 0
  %v1509 = vadd.s32 %v1499, %v1503
  %v1510 = vadd.s32 %v1502, %v1508
  %vm1511 = vc.u32 %v1509, %v1505
  %v1512 = vsel %vm1511, 1, 0
  %v1513 = vadd.s32 %v1509, %v1505
  %v1514 = vadd.s32 %v1510, %v1512
  %v1515 = vadd.s32 %v1514, %v1504
  %v1516 = vadd.s32 %v1515, %v1506
  %v1517 = vand.u32 %v1494, 65535
  %v1518 = vshrl.u32 %v1494, 16
  %v1519 = vand.u32 %v1489, 65535
  %v1520 = vshrl.u32 %v1489, 16
  %v1521 = vmul.u32 %v1517, %v1519
  %v1522 = vmul.u32 %v1517, %v1520
  %v1523 = vmul.u32 %v1518, %v1519
  %v1524 = vmul.u32 %v1518, %v1520
  %v1525 = vshll.u32 %v1522, 16
  %v1526 = vshrl.u32 %v1522, 16
  %v1527 = vshll.u32 %v1523, 16
  %v1528 = vshrl.u32 %v1523, 16
  %vm1529 = vc.u32 %v1521, %v1525
  %v1530 = vsel %vm1529, 1, 0
  %v1531 = vadd.s32 %v1521, %v1525
  %v1532 = vadd.s32 %v1524, %v1530
  %vm1533 = vc.u32 %v1531, %v1527
  %v1534 = vsel %vm1533, 1, 0
  %v1535 = vadd.s32 %v1531, %v1527
  %v1536 = vadd.s32 %v1532, %v1534
  %v1537 = vadd.s32 %v1536, %v1526
  %v1538 = vadd.s32 %v1537, %v1528
  %v1539 = vmul.u32 %v1494, %v1485
  %v1540 = vadd.s32 %v1516, %v1535
  %vm1541 = vc.u32 %v1516, %v1535
  %v1542 = vadd.s32 %v1538, 1
  %v1543 = vsel %vm1541, %v1542, %v1538
  %v1544 = vadd.s32 %v1539, %v1543
  %v1545 = vadd.s32 %v1544, 536870912
  %v1546 = vshrl.u32 %v1545, 30
  %v1547 = vshll.u32 %v1546, 30
  %v1548 = vsub.s32 %v1544, %v1547
  %vm1549 = vcmp.lt.s32.totalorder %v1548, 0
  %v1550 = vsub.s32 0, %v1548
  %v1551 = vsel %vm1549, %v1550, %v1548
  %v1552 = vclz %v1551
  %v1553 = vsub.s32 %v1552, 2
  %vm1554 = vcmp.gt.s32.totalorder 0, %v1553
  %v1555 = vsel %vm1554, 0, %v1553
  %v1556 = vsub.s32 32, %v1555
  %v1557 = vshll.u32 %v1548, %v1555
  %v1558 = vshrl.u32 %v1540, %v1556
  %v1559 = vor.u32 %v1557, %v1558
  %v1560 = vsub.s32 4294967266, %v1555
  %v1561 = vadd.s32 %v1560, 127
  %v1562 = vshll.u32 %v1561, 23
  %v1563 = vor.u32 4788187, %v1562
  %v1564 = vand.u32 2147483647, %v1563
  %v1566 = vcvt.s32.f32 %v1559
  %v1567 = vmul.f32 %v1566, %v1564
  %v1568 = vxor.u32 %v1567, 2147483648
  %v1569 = vsel %vm1448, %v1568, %v1567
  %v1570 = vsub.s32 4, %v1546
  %v1571 = vsel %vm1448, %v1570, %v1546
  %v1572 = vsel %vm1447, %v1288, %v1569
  %v1573 = vsel %vm1447, 0, %v1571
  %v1574 = vmul.f32 %v1572, %v1572
  %v1575 = vmul.f32 %v1574, -0.001358992
  %v1576 = vadd.f32 %v1575, 0.041655596
  %v1577 = vmul.f32 %v1574, %v1576
  %v1578 = vadd.f32 %v1577, -0.4999988
  %v1579 = vmul.f32 %v1574, %v1578
  %v1580 = vadd.f32 1.0, %v1579
  %v1581 = vmul.f32 %v1572, %v1572
  %v1582 = vmul.f32 %v1581, -0.00019511016
  %v1583 = vadd.f32 %v1582, 0.008332121
  %v1584 = vmul.f32 %v1581, %v1583
  %v1585 = vadd.f32 %v1584, -0.16666654
  %v1586 = vmul.f32 %v1581, %v1585
  %v1587 = vadd.f32 %v1586, 1.0
  %v1588 = vmul.f32 %v1587, %v1572
  %vm1589 = vweird.f32 %v1288
  %v1590 = vadd.s32 %v1573, 3
  %v1591 = vand.u32 %v1590, 3
  %vm1592 = vcmp.lt.s32.totalorder %v1591, 2
  %vm1593 = vcmp.eq.s32.totalorder %v1591, 0
  %v1594 = vxor.u32 %v1588, 2147483648
  %v1595 = vsel %vm1593, %v1580, %v1594
  %vm1596 = vcmp.eq.s32.totalorder %v1591, 2
  %v1597 = vxor.u32 %v1580, 2147483648
  %v1598 = vsel %vm1596, %v1597, %v1588
  %v1599 = vsel %vm1592, %v1595, %v1598
  %v1600 = vsel %vm1589, nan, %v1599
  %v1601 = vand.u32 2147483647, %v1289
  %vm1602 = vcmp.le.f32.partialorder %v1601, 0.7853982
  %vm1603 = vcmp.lt.s32.totalorder %v1289, 0
  %v1604 = vand.u32 %v1289, 2139095040
  %v1605 = vshrl.u32 %v1604, 23
  %v1606 = vsub.s32 %v1605, 127
  %v1607 = vand.u32 2147483647, %v1289
  %v1608 = vand.u32 %v1607, 8388607
  %v1609 = vor.u32 %v1608, 8388608
  %v1610 = vsub.s32 0, %v1609
  %v1611 = vadd.s32 %v1606, 1
  %vm1612 = vcmp.gt.s32.totalorder %v1611, 0
  %v1613 = vsel %vm1612, %v1611, 0
  %v1614 = vshrl.u32 %v1613, 5
  %v1615 = vand.u32 %v1613, 31
  %v1616 = vsub.s32 32, %v1615
  %v1617 = vshrl.u32 683565275, %v1616
  %v1618 = vshll.u32 683565275, %v1615
  %v1619 = vshrl.u32 2475754826, %v1616
  %v1620 = vor.u32 %v1618, %v1619
  %v1621 = vshll.u32 2475754826, %v1615
  %v1622 = vshrl.u32 2131351028, %v1616
  %v1623 = vor.u32 %v1621, %v1622
  %v1624 = vshll.u32 2131351028, %v1615
  %v1625 = vshrl.u32 2102212464, %v1616
  %v1626 = vor.u32 %v1624, %v1625
  %v1627 = vshll.u32 2102212464, %v1615
  %v1628 = vshrl.u32 920167782, %v1616
  %v1629 = vor.u32 %v1627, %v1628
  %v1630 = vshll.u32 920167782, %v1615
  %v1631 = vshrl.u32 1326507024, %v1616
  %v1632 = vor.u32 %v1630, %v1631
  %vm1633 = vcmp.lt.s32.totalorder %v1614, 1
  %vm1634 = vcmp.lt.s32.totalorder %v1614, 2
  %vm1635 = vcmp.lt.s32.totalorder %v1614, 3
  %vm1636 = vcmp.lt.s32.totalorder %v1614, 4
  %v1637 = vsel %vm1633, %v1617, %v1620
  %v1638 = vsel %vm1636, %v1626, 2102212464
  %v1639 = vsel %vm1635, %v1623, %v1638
  %v1640 = vsel %vm1634, %v1637, %v1639
  %v1641 = vsel %vm1633, %v1620, %v1623
  %v1642 = vsel %vm1636, %v1629, 920167782
  %v1643 = vsel %vm1635, %v1626, %v1642
  %v1644 = vsel %vm1634, %v1641, %v1643
  %v1645 = vsel %vm1633, %v1623, %v1626
  %v1646 = vsel %vm1636, %v1632, 1326507024
  %v1647 = vsel %vm1635, %v1629, %v1646
  %v1648 = vsel %vm1634, %v1645, %v1647
  %v1649 = vshll.u32 %v1609, 8
  %v1650 = vand.u32 %v1649, 65535
  %v1651 = vshrl.u32 %v1649, 16
  %v1652 = vand.u32 %v1648, 65535
  %v1653 = vshrl.u32 %v1648, 16
  %v1654 = vmul.u32 %v1650, %v1652
  %v1655 = vmul.u32 %v1650, %v1653
  %v1656 = vmul.u32 %v1651, %v1652
  %v1657 = vmul.u32 %v1651, %v1653
  %v1658 = vshll.u32 %v1655, 16
  %v1659 = vshrl.u32 %v1655, 16
  %v1660 = vshll.u32 %v1656, 16
  %v1661 = vshrl.u32 %v1656, 16
  %vm1662 = vc.u32 %v1654, %v1658
  %v1663 = vsel %vm1662, 1, 0
  %v1664 = vadd.s32 %v1654, %v1658
  %v1665 = vadd.s32 %v1657, %v1663
  %vm1666 = vc.u32 %v1664, %v1660
  %v1667 = vsel %vm1666, 1, 0
  %v1668 = vadd.s32 %v1664, %v1660
  %v1669 = vadd.s32 %v1665, %v1667
  %v1670 = vadd.s32 %v1669, %v1659
  %v1671 = vadd.s32 %v1670, %v1661
  %v1672 = vand.u32 %v1649, 65535
  %v1673 = vshrl.u32 %v1649, 16
  %v1674 = vand.u32 %v1644, 65535
  %v1675 = vshrl.u32 %v1644, 16
  %v1676 = vmul.u32 %v1672, %v1674
  %v1677 = vmul.u32 %v1672, %v1675
  %v1678 = vmul.u32 %v1673, %v1674
  %v1679 = vmul.u32 %v1673, %v1675
  %v1680 = vshll.u32 %v1677, 16
  %v1681 = vshrl.u32 %v1677, 16
  %v1682 = vshll.u32 %v1678, 16
  %v1683 = vshrl.u32 %v1678, 16
  %vm1684 = vc.u32 %v1676, %v1680
  %v1685 = vsel %vm1684, 1, 0
  %v1686 = vadd.s32 %v1676, %v1680
  %v1687 = vadd.s32 %v1679, %v1685
  %vm1688 = vc.u32 %v1686, %v1682
  %v1689 = vsel %vm1688, 1, 0
  %v1690 = vadd.s32 %v1686, %v1682
  %v1691 = vadd.s32 %v1687, %v1689
  %v1692 = vadd.s32 %v1691, %v1681
  %v1693 = vadd.s32 %v1692, %v1683
  %v1694 = vmul.u32 %v1649, %v1640
  %v1695 = vadd.s32 %v1671, %v1690
  %vm1696 = vc.u32 %v1671, %v1690
  %v1697 = vadd.s32 %v1693, 1
  %v1698 = vsel %vm1696, %v1697, %v1693
  %v1699 = vadd.s32 %v1694, %v1698
  %v1700 = vadd.s32 %v1699, 536870912
  %v1701 = vshrl.u32 %v1700, 30
  %v1702 = vshll.u32 %v1701, 30
  %v1703 = vsub.s32 %v1699, %v1702
  %vm1704 = vcmp.lt.s32.totalorder %v1703, 0
  %v1705 = vsub.s32 0, %v1703
  %v1706 = vsel %vm1704, %v1705, %v1703
  %v1707 = vclz %v1706
  %v1708 = vsub.s32 %v1707, 2
  %vm1709 = vcmp.gt.s32.totalorder 0, %v1708
  %v1710 = vsel %vm1709, 0, %v1708
  %v1711 = vsub.s32 32, %v1710
  %v1712 = vshll.u32 %v1703, %v1710
  %v1713 = vshrl.u32 %v1695, %v1711
  %v1714 = vor.u32 %v1712, %v1713
  %v1715 = vsub.s32 4294967266, %v1710
  %v1716 = vadd.s32 %v1715, 127
  %v1717 = vshll.u32 %v1716, 23
  %v1718 = vor.u32 4788187, %v1717
  %v1719 = vand.u32 2147483647, %v1718
  %v1721 = vcvt.s32.f32 %v1714
  %v1722 = vmul.f32 %v1721, %v1719
  %v1723 = vxor.u32 %v1722, 2147483648
  %v1724 = vsel %vm1603, %v1723, %v1722
  %v1725 = vsub.s32 4, %v1701
  %v1726 = vsel %vm1603, %v1725, %v1701
  %v1727 = vsel %vm1602, %v1289, %v1724
  %v1728 = vsel %vm1602, 0, %v1726
  %v1729 = vmul.f32 %v1727, %v1727
  %v1730 = vmul.f32 %v1729, -0.001358992
  %v1731 = vadd.f32 %v1730, 0.041655596
  %v1732 = vmul.f32 %v1729, %v1731
  %v1733 = vadd.f32 %v1732, -0.4999988
  %v1734 = vmul.f32 %v1729, %v1733
  %v1735 = vadd.f32 1.0, %v1734
  %v1736 = vmul.f32 %v1727, %v1727
  %v1737 = vmul.f32 %v1736, -0.00019511016
  %v1738 = vadd.f32 %v1737, 0.008332121
  %v1739 = vmul.f32 %v1736, %v1738
  %v1740 = vadd.f32 %v1739, -0.16666654
  %v1741 = vmul.f32 %v1736, %v1740
  %v1742 = vadd.f32 %v1741, 1.0
  %v1743 = vmul.f32 %v1742, %v1727
  %vm1744 = vweird.f32 %v1289
  %v1745 = vadd.s32 %v1728, 3
  %v1746 = vand.u32 %v1745, 3
  %vm1747 = vcmp.lt.s32.totalorder %v1746, 2
  %vm1748 = vcmp.eq.s32.totalorder %v1746, 0
  %v1749 = vxor.u32 %v1743, 2147483648
  %v1750 = vsel %vm1748, %v1735, %v1749
  %vm1751 = vcmp.eq.s32.totalorder %v1746, 2
  %v1752 = vxor.u32 %v1735, 2147483648
  %v1753 = vsel %vm1751, %v1752, %v1743
  %v1754 = vsel %vm1747, %v1750, %v1753
  %v1755 = vsel %vm1744, nan, %v1754
  %v1756 = vand.u32 2147483647, %v1290
  %vm1757 = vcmp.le.f32.partialorder %v1756, 0.7853982
  %vm1758 = vcmp.lt.s32.totalorder %v1290, 0
  %v1759 = vand.u32 %v1290, 2139095040
  %v1760 = vshrl.u32 %v1759, 23
  %v1761 = vsub.s32 %v1760, 127
  %v1762 = vand.u32 2147483647, %v1290
  %v1763 = vand.u32 %v1762, 8388607
  %v1764 = vor.u32 %v1763, 8388608
  %v1765 = vsub.s32 0, %v1764
  %v1766 = vadd.s32 %v1761, 1
  %vm1767 = vcmp.gt.s32.totalorder %v1766, 0
  %v1768 = vsel %vm1767, %v1766, 0
  %v1769 = vshrl.u32 %v1768, 5
  %v1770 = vand.u32 %v1768, 31
  %v1771 = vsub.s32 32, %v1770
  %v1772 = vshrl.u32 683565275, %v1771
  %v1773 = vshll.u32 683565275, %v1770
  %v1774 = vshrl.u32 2475754826, %v1771
  %v1775 = vor.u32 %v1773, %v1774
  %v1776 = vshll.u32 2475754826, %v1770
  %v1777 = vshrl.u32 2131351028, %v1771
  %v1778 = vor.u32 %v1776, %v1777
  %v1779 = vshll.u32 2131351028, %v1770
  %v1780 = vshrl.u32 2102212464, %v1771
  %v1781 = vor.u32 %v1779, %v1780
  %v1782 = vshll.u32 2102212464, %v1770
  %v1783 = vshrl.u32 920167782, %v1771
  %v1784 = vor.u32 %v1782, %v1783
  %v1785 = vshll.u32 920167782, %v1770
  %v1786 = vshrl.u32 1326507024, %v1771
  %v1787 = vor.u32 %v1785, %v1786
  %vm1788 = vcmp.lt.s32.totalorder %v1769, 1
  %vm1789 = vcmp.lt.s32.totalorder %v1769, 2
  %vm1790 = vcmp.lt.s32.totalorder %v1769, 3
  %vm1791 = vcmp.lt.s32.totalorder %v1769, 4
  %v1792 = vsel %vm1788, %v1772, %v1775
  %v1793 = vsel %vm1791, %v1781, 2102212464
  %v1794 = vsel %vm1790, %v1778, %v1793
  %v1795 = vsel %vm1789, %v1792, %v1794
  %v1796 = vsel %vm1788, %v1775, %v1778
  %v1797 = vsel %vm1791, %v1784, 920167782
  %v1798 = vsel %vm1790, %v1781, %v1797
  %v1799 = vsel %vm1789, %v1796, %v1798
  %v1800 = vsel %vm1788, %v1778, %v1781
  %v1801 = vsel %vm1791, %v1787, 1326507024
  %v1802 = vsel %vm1790, %v1784, %v1801
  %v1803 = vsel %vm1789, %v1800, %v1802
  %v1804 = vshll.u32 %v1764, 8
  %v1805 = vand.u32 %v1804, 65535
  %v1806 = vshrl.u32 %v1804, 16
  %v1807 = vand.u32 %v1803, 65535
  %v1808 = vshrl.u32 %v1803, 16
  %v1809 = vmul.u32 %v1805, %v1807
  %v1810 = vmul.u32 %v1805, %v1808
  %v1811 = vmul.u32 %v1806, %v1807
  %v1812 = vmul.u32 %v1806, %v1808
  %v1813 = vshll.u32 %v1810, 16
  %v1814 = vshrl.u32 %v1810, 16
  %v1815 = vshll.u32 %v1811, 16
  %v1816 = vshrl.u32 %v1811, 16
  %vm1817 = vc.u32 %v1809, %v1813
  %v1818 = vsel %vm1817, 1, 0
  %v1819 = vadd.s32 %v1809, %v1813
  %v1820 = vadd.s32 %v1812, %v1818
  %vm1821 = vc.u32 %v1819, %v1815
  %v1822 = vsel %vm1821, 1, 0
  %v1823 = vadd.s32 %v1819, %v1815
  %v1824 = vadd.s32 %v1820, %v1822
  %v1825 = vadd.s32 %v1824, %v1814
  %v1826 = vadd.s32 %v1825, %v1816
  %v1827 = vand.u32 %v1804, 65535
  %v1828 = vshrl.u32 %v1804, 16
  %v1829 = vand.u32 %v1799, 65535
  %v1830 = vshrl.u32 %v1799, 16
  %v1831 = vmul.u32 %v1827, %v1829
  %v1832 = vmul.u32 %v1827, %v1830
  %v1833 = vmul.u32 %v1828, %v1829
  %v1834 = vmul.u32 %v1828, %v1830
  %v1835 = vshll.u32 %v1832, 16
  %v1836 = vshrl.u32 %v1832, 16
  %v1837 = vshll.u32 %v1833, 16
  %v1838 = vshrl.u32 %v1833, 16
  %vm1839 = vc.u32 %v1831, %v1835
  %v1840 = vsel %vm1839, 1, 0
  %v1841 = vadd.s32 %v1831, %v1835
  %v1842 = vadd.s32 %v1834, %v1840
  %vm1843 = vc.u32 %v1841, %v1837
  %v1844 = vsel %vm1843, 1, 0
  %v1845 = vadd.s32 %v1841, %v1837
  %v1846 = vadd.s32 %v1842, %v1844
  %v1847 = vadd.s32 %v1846, %v1836
  %v1848 = vadd.s32 %v1847, %v1838
  %v1849 = vmul.u32 %v1804, %v1795
  %v1850 = vadd.s32 %v1826, %v1845
  %vm1851 = vc.u32 %v1826, %v1845
  %v1852 = vadd.s32 %v1848, 1
  %v1853 = vsel %vm1851, %v1852, %v1848
  %v1854 = vadd.s32 %v1849, %v1853
  %v1855 = vadd.s32 %v1854, 536870912
  %v1856 = vshrl.u32 %v1855, 30
  %v1857 = vshll.u32 %v1856, 30
  %v1858 = vsub.s32 %v1854, %v1857
  %vm1859 = vcmp.lt.s32.totalorder %v1858, 0
  %v1860 = vsub.s32 0, %v1858
  %v1861 = vsel %vm1859, %v1860, %v1858
  %v1862 = vclz %v1861
  %v1863 = vsub.s32 %v1862, 2
  %vm1864 = vcmp.gt.s32.totalorder 0, %v1863
  %v1865 = vsel %vm1864, 0, %v1863
  %v1866 = vsub.s32 32, %v1865
  %v1867 = vshll.u32 %v1858, %v1865
  %v1868 = vshrl.u32 %v1850, %v1866
  %v1869 = vor.u32 %v1867, %v1868
  %v1870 = vsub.s32 4294967266, %v1865
  %v1871 = vadd.s32 %v1870, 127
  %v1872 = vshll.u32 %v1871, 23
  %v1873 = vor.u32 4788187, %v1872
  %v1874 = vand.u32 2147483647, %v1873
  %v1876 = vcvt.s32.f32 %v1869
  %v1877 = vmul.f32 %v1876, %v1874
  %v1878 = vxor.u32 %v1877, 2147483648
  %v1879 = vsel %vm1758, %v1878, %v1877
  %v1880 = vsub.s32 4, %v1856
  %v1881 = vsel %vm1758, %v1880, %v1856
  %v1882 = vsel %vm1757, %v1290, %v1879
  %v1883 = vsel %vm1757, 0, %v1881
  %v1884 = vmul.f32 %v1882, %v1882
  %v1885 = vmul.f32 %v1884, -0.001358992
  %v1886 = vadd.f32 %v1885, 0.041655596
  %v1887 = vmul.f32 %v1884, %v1886
  %v1888 = vadd.f32 %v1887, -0.4999988
  %v1889 = vmul.f32 %v1884, %v1888
  %v1890 = vadd.f32 1.0, %v1889
  %v1891 = vmul.f32 %v1882, %v1882
  %v1892 = vmul.f32 %v1891, -0.00019511016
  %v1893 = vadd.f32 %v1892, 0.008332121
  %v1894 = vmul.f32 %v1891, %v1893
  %v1895 = vadd.f32 %v1894, -0.16666654
  %v1896 = vmul.f32 %v1891, %v1895
  %v1897 = vadd.f32 %v1896, 1.0
  %v1898 = vmul.f32 %v1897, %v1882
  %vm1899 = vweird.f32 %v1290
  %v1900 = vadd.s32 %v1883, 3
  %v1901 = vand.u32 %v1900, 3
  %vm1902 = vcmp.lt.s32.totalorder %v1901, 2
  %vm1903 = vcmp.eq.s32.totalorder %v1901, 0
  %v1904 = vxor.u32 %v1898, 2147483648
  %v1905 = vsel %vm1903, %v1890, %v1904
  %vm1906 = vcmp.eq.s32.totalorder %v1901, 2
  %v1907 = vxor.u32 %v1890, 2147483648
  %v1908 = vsel %vm1906, %v1907, %v1898
  %v1909 = vsel %vm1902, %v1905, %v1908
  %v1910 = vsel %vm1899, nan, %v1909
  %v1911 = vand.u32 2147483647, %v1287
  %vm1912 = vcmp.le.f32.partialorder %v1911, 0.7853982
  %vm1913 = vcmp.lt.s32.totalorder %v1287, 0
  %v1914 = vand.u32 %v1287, 2139095040
  %v1915 = vshrl.u32 %v1914, 23
  %v1916 = vsub.s32 %v1915, 127
  %v1917 = vand.u32 2147483647, %v1287
  %v1918 = vand.u32 %v1917, 8388607
  %v1919 = vor.u32 %v1918, 8388608
  %v1920 = vsub.s32 0, %v1919
  %v1921 = vadd.s32 %v1916, 1
  %vm1922 = vcmp.gt.s32.totalorder %v1921, 0
  %v1923 = vsel %vm1922, %v1921, 0
  %v1924 = vshrl.u32 %v1923, 5
  %v1925 = vand.u32 %v1923, 31
  %v1926 = vsub.s32 32, %v1925
  %v1927 = vshrl.u32 683565275, %v1926
  %v1928 = vshll.u32 683565275, %v1925
  %v1929 = vshrl.u32 2475754826, %v1926
  %v1930 = vor.u32 %v1928, %v1929
  %v1931 = vshll.u32 2475754826, %v1925
  %v1932 = vshrl.u32 2131351028, %v1926
  %v1933 = vor.u32 %v1931, %v1932
  %v1934 = vshll.u32 2131351028, %v1925
  %v1935 = vshrl.u32 2102212464, %v1926
  %v1936 = vor.u32 %v1934, %v1935
  %v1937 = vshll.u32 2102212464, %v1925
  %v1938 = vshrl.u32 920167782, %v1926
  %v1939 = vor.u32 %v1937, %v1938
  %v1940 = vshll.u32 920167782, %v1925
  %v1941 = vshrl.u32 1326507024, %v1926
  %v1942 = vor.u32 %v1940, %v1941
  %vm1943 = vcmp.lt.s32.totalorder %v1924, 1
  %vm1944 = vcmp.lt.s32.totalorder %v1924, 2
  %vm1945 = vcmp.lt.s32.totalorder %v1924, 3
  %vm1946 = vcmp.lt.s32.totalorder %v1924, 4
  %v1947 = vsel %vm1943, %v1927, %v1930
  %v1948 = vsel %vm1946, %v1936, 2102212464
  %v1949 = vsel %vm1945, %v1933, %v1948
  %v1950 = vsel %vm1944, %v1947, %v1949
  %v1951 = vsel %vm1943, %v1930, %v1933
  %v1952 = vsel %vm1946, %v1939, 920167782
  %v1953 = vsel %vm1945, %v1936, %v1952
  %v1954 = vsel %vm1944, %v1951, %v1953
  %v1955 = vsel %vm1943, %v1933, %v1936
  %v1956 = vsel %vm1946, %v1942, 1326507024
  %v1957 = vsel %vm1945, %v1939, %v1956
  %v1958 = vsel %vm1944, %v1955, %v1957
  %v1959 = vshll.u32 %v1919, 8
  %v1960 = vand.u32 %v1959, 65535
  %v1961 = vshrl.u32 %v1959, 16
  %v1962 = vand.u32 %v1958, 65535
  %v1963 = vshrl.u32 %v1958, 16
  %v1964 = vmul.u32 %v1960, %v1962
  %v1965 = vmul.u32 %v1960, %v1963
  %v1966 = vmul.u32 %v1961, %v1962
  %v1967 = vmul.u32 %v1961, %v1963
  %v1968 = vshll.u32 %v1965, 16
  %v1969 = vshrl.u32 %v1965, 16
  %v1970 = vshll.u32 %v1966, 16
  %v1971 = vshrl.u32 %v1966, 16
  %vm1972 = vc.u32 %v1964, %v1968
  %v1973 = vsel %vm1972, 1, 0
  %v1974 = vadd.s32 %v1964, %v1968
  %v1975 = vadd.s32 %v1967, %v1973
  %vm1976 = vc.u32 %v1974, %v1970
  %v1977 = vsel %vm1976, 1, 0
  %v1978 = vadd.s32 %v1974, %v1970
  %v1979 = vadd.s32 %v1975, %v1977
  %v1980 = vadd.s32 %v1979, %v1969
  %v1981 = vadd.s32 %v1980, %v1971
  %v1982 = vand.u32 %v1959, 65535
  %v1983 = vshrl.u32 %v1959, 16
  %v1984 = vand.u32 %v1954, 65535
  %v1985 = vshrl.u32 %v1954, 16
  %v1986 = vmul.u32 %v1982, %v1984
  %v1987 = vmul.u32 %v1982, %v1985
  %v1988 = vmul.u32 %v1983, %v1984
  %v1989 = vmul.u32 %v1983, %v1985
  %v1990 = vshll.u32 %v1987, 16
  %v1991 = vshrl.u32 %v1987, 16
  %v1992 = vshll.u32 %v1988, 16
  %v1993 = vshrl.u32 %v1988, 16
  %vm1994 = vc.u32 %v1986, %v1990
  %v1995 = vsel %vm1994, 1, 0
  %v1996 = vadd.s32 %v1986, %v1990
  %v1997 = vadd.s32 %v1989, %v1995
  %vm1998 = vc.u32 %v1996, %v1992
  %v1999 = vsel %vm1998, 1, 0
  %v2000 = vadd.s32 %v1996, %v1992
  %v2001 = vadd.s32 %v1997, %v1999
  %v2002 = vadd.s32 %v2001, %v1991
  %v2003 = vadd.s32 %v2002, %v1993
  %v2004 = vmul.u32 %v1959, %v1950
  %v2005 = vadd.s32 %v1981, %v2000
  %vm2006 = vc.u32 %v1981, %v2000
  %v2007 = vadd.s32 %v2003, 1
  %v2008 = vsel %vm2006, %v2007, %v2003
  %v2009 = vadd.s32 %v2004, %v2008
  %v2010 = vadd.s32 %v2009, 536870912
  %v2011 = vshrl.u32 %v2010, 30
  %v2012 = vshll.u32 %v2011, 30
  %v2013 = vsub.s32 %v2009, %v2012
  %vm2014 = vcmp.lt.s32.totalorder %v2013, 0
  %v2015 = vsub.s32 0, %v2013
  %v2016 = vsel %vm2014, %v2015, %v2013
  %v2017 = vclz %v2016
  %v2018 = vsub.s32 %v2017, 2
  %vm2019 = vcmp.gt.s32.totalorder 0, %v2018
  %v2020 = vsel %vm2019, 0, %v2018
  %v2021 = vsub.s32 32, %v2020
  %v2022 = vshll.u32 %v2013, %v2020
  %v2023 = vshrl.u32 %v2005, %v2021
  %v2024 = vor.u32 %v2022, %v2023
  %v2025 = vsub.s32 4294967266, %v2020
  %v2026 = vadd.s32 %v2025, 127
  %v2027 = vshll.u32 %v2026, 23
  %v2028 = vor.u32 4788187, %v2027
  %v2029 = vand.u32 2147483647, %v2028
  %v2031 = vcvt.s32.f32 %v2024
  %v2032 = vmul.f32 %v2031, %v2029
  %v2033 = vxor.u32 %v2032, 2147483648
  %v2034 = vsel %vm1913, %v2033, %v2032
  %v2035 = vsub.s32 4, %v2011
  %v2036 = vsel %vm1913, %v2035, %v2011
  %v2037 = vsel %vm1912, %v1287, %v2034
  %v2038 = vsel %vm1912, 0, %v2036
  %v2039 = vmul.f32 %v2037, %v2037
  %v2040 = vmul.f32 %v2039, -0.001358992
  %v2041 = vadd.f32 %v2040, 0.041655596
  %v2042 = vmul.f32 %v2039, %v2041
  %v2043 = vadd.f32 %v2042, -0.4999988
  %v2044 = vmul.f32 %v2039, %v2043
  %v2045 = vadd.f32 1.0, %v2044
  %v2046 = vmul.f32 %v2037, %v2037
  %v2047 = vmul.f32 %v2046, -0.00019511016
  %v2048 = vadd.f32 %v2047, 0.008332121
  %v2049 = vmul.f32 %v2046, %v2048
  %v2050 = vadd.f32 %v2049, -0.16666654
  %v2051 = vmul.f32 %v2046, %v2050
  %v2052 = vadd.f32 %v2051, 1.0
  %v2053 = vmul.f32 %v2052, %v2037
  %vm2054 = vweird.f32 %v1287
  %v2055 = vand.u32 %v2038, 3
  %vm2056 = vcmp.lt.s32.totalorder %v2055, 2
  %vm2057 = vcmp.eq.s32.totalorder %v2055, 0
  %v2058 = vxor.u32 %v2053, 2147483648
  %v2059 = vsel %vm2057, %v2045, %v2058
  %vm2060 = vcmp.eq.s32.totalorder %v2055, 2
  %v2061 = vxor.u32 %v2045, 2147483648
  %v2062 = vsel %vm2060, %v2061, %v2053
  %v2063 = vsel %vm2056, %v2059, %v2062
  %v2064 = vsel %vm2054, nan, %v2063
  %v2065 = vand.u32 2147483647, %v1288
  %vm2066 = vcmp.le.f32.partialorder %v2065, 0.7853982
  %vm2067 = vcmp.lt.s32.totalorder %v1288, 0
  %v2068 = vand.u32 %v1288, 2139095040
  %v2069 = vshrl.u32 %v2068, 23
  %v2070 = vsub.s32 %v2069, 127
  %v2071 = vand.u32 2147483647, %v1288
  %v2072 = vand.u32 %v2071, 8388607
  %v2073 = vor.u32 %v2072, 8388608
  %v2074 = vsub.s32 0, %v2073
  %v2075 = vadd.s32 %v2070, 1
  %vm2076 = vcmp.gt.s32.totalorder %v2075, 0
  %v2077 = vsel %vm2076, %v2075, 0
  %v2078 = vshrl.u32 %v2077, 5
  %v2079 = vand.u32 %v2077, 31
  %v2080 = vsub.s32 32, %v2079
  %v2081 = vshrl.u32 683565275, %v2080
  %v2082 = vshll.u32 683565275, %v2079
  %v2083 = vshrl.u32 2475754826, %v2080
  %v2084 = vor.u32 %v2082, %v2083
  %v2085 = vshll.u32 2475754826, %v2079
  %v2086 = vshrl.u32 2131351028, %v2080
  %v2087 = vor.u32 %v2085, %v2086
  %v2088 = vshll.u32 2131351028, %v2079
  %v2089 = vshrl.u32 2102212464, %v2080
  %v2090 = vor.u32 %v2088, %v2089
  %v2091 = vshll.u32 2102212464, %v2079
  %v2092 = vshrl.u32 920167782, %v2080
  %v2093 = vor.u32 %v2091, %v2092
  %v2094 = vshll.u32 920167782, %v2079
  %v2095 = vshrl.u32 1326507024, %v2080
  %v2096 = vor.u32 %v2094, %v2095
  %vm2097 = vcmp.lt.s32.totalorder %v2078, 1
  %vm2098 = vcmp.lt.s32.totalorder %v2078, 2
  %vm2099 = vcmp.lt.s32.totalorder %v2078, 3
  %vm2100 = vcmp.lt.s32.totalorder %v2078, 4
  %v2101 = vsel %vm2097, %v2081, %v2084
  %v2102 = vsel %vm2100, %v2090, 2102212464
  %v2103 = vsel %vm2099, %v2087, %v2102
  %v2104 = vsel %vm2098, %v2101, %v2103
  %v2105 = vsel %vm2097, %v2084, %v2087
  %v2106 = vsel %vm2100, %v2093, 920167782
  %v2107 = vsel %vm2099, %v2090, %v2106
  %v2108 = vsel %vm2098, %v2105, %v2107
  %v2109 = vsel %vm2097, %v2087, %v2090
  %v2110 = vsel %vm2100, %v2096, 1326507024
  %v2111 = vsel %vm2099, %v2093, %v2110
  %v2112 = vsel %vm2098, %v2109, %v2111
  %v2113 = vshll.u32 %v2073, 8
  %v2114 = vand.u32 %v2113, 65535
  %v2115 = vshrl.u32 %v2113, 16
  %v2116 = vand.u32 %v2112, 65535
  %v2117 = vshrl.u32 %v2112, 16
  %v2118 = vmul.u32 %v2114, %v2116
  %v2119 = vmul.u32 %v2114, %v2117
  %v2120 = vmul.u32 %v2115, %v2116
  %v2121 = vmul.u32 %v2115, %v2117
  %v2122 = vshll.u32 %v2119, 16
  %v2123 = vshrl.u32 %v2119, 16
  %v2124 = vshll.u32 %v2120, 16
  %v2125 = vshrl.u32 %v2120, 16
  %vm2126 = vc.u32 %v2118, %v2122
  %v2127 = vsel %vm2126, 1, 0
  %v2128 = vadd.s32 %v2118, %v2122
  %v2129 = vadd.s32 %v2121, %v2127
  %vm2130 = vc.u32 %v2128, %v2124
  %v2131 = vsel %vm2130, 1, 0
  %v2132 = vadd.s32 %v2128, %v2124
  %v2133 = vadd.s32 %v2129, %v2131
  %v2134 = vadd.s32 %v2133, %v2123
  %v2135 = vadd.s32 %v2134, %v2125
  %v2136 = vand.u32 %v2113, 65535
  %v2137 = vshrl.u32 %v2113, 16
  %v2138 = vand.u32 %v2108, 65535
  %v2139 = vshrl.u32 %v2108, 16
  %v2140 = vmul.u32 %v2136, %v2138
  %v2141 = vmul.u32 %v2136, %v2139
  %v2142 = vmul.u32 %v2137, %v2138
  %v2143 = vmul.u32 %v2137, %v2139
  %v2144 = vshll.u32 %v2141, 16
  %v2145 = vshrl.u32 %v2141, 16
  %v2146 = vshll.u32 %v2142, 16
  %v2147 = vshrl.u32 %v2142, 16
  %vm2148 = vc.u32 %v2140, %v2144
  %v2149 = vsel %vm2148, 1, 0
  %v2150 = vadd.s32 %v2140, %v2144
  %v2151 = vadd.s32 %v2143, %v2149
  %vm2152 = vc.u32 %v2150, %v2146
  %v2153 = vsel %vm2152, 1, 0
  %v2154 = vadd.s32 %v2150, %v2146
  %v2155 = vadd.s32 %v2151, %v2153
  %v2156 = vadd.s32 %v2155, %v2145
  %v2157 = vadd.s32 %v2156, %v2147
  %v2158 = vmul.u32 %v2113, %v2104
  %v2159 = vadd.s32 %v2135, %v2154
  %vm2160 = vc.u32 %v2135, %v2154
  %v2161 = vadd.s32 %v2157, 1
  %v2162 = vsel %vm2160, %v2161, %v2157
  %v2163 = vadd.s32 %v2158, %v2162
  %v2164 = vadd.s32 %v2163, 536870912
  %v2165 = vshrl.u32 %v2164, 30
  %v2166 = vshll.u32 %v2165, 30
  %v2167 = vsub.s32 %v2163, %v2166
  %vm2168 = vcmp.lt.s32.totalorder %v2167, 0
  %v2169 = vsub.s32 0, %v2167
  %v2170 = vsel %vm2168, %v2169, %v2167
  %v2171 = vclz %v2170
  %v2172 = vsub.s32 %v2171, 2
  %vm2173 = vcmp.gt.s32.totalorder 0, %v2172
  %v2174 = vsel %vm2173, 0, %v2172
  %v2175 = vsub.s32 32, %v2174
  %v2176 = vshll.u32 %v2167, %v2174
  %v2177 = vshrl.u32 %v2159, %v2175
  %v2178 = vor.u32 %v2176, %v2177
  %v2179 = vsub.s32 4294967266, %v2174
  %v2180 = vadd.s32 %v2179, 127
  %v2181 = vshll.u32 %v2180, 23
  %v2182 = vor.u32 4788187, %v2181
  %v2183 = vand.u32 2147483647, %v2182
  %v2185 = vcvt.s32.f32 %v2178
  %v2186 = vmul.f32 %v2185, %v2183
  %v2187 = vxor.u32 %v2186, 2147483648
  %v2188 = vsel %vm2067, %v2187, %v2186
  %v2189 = vsub.s32 4, %v2165
  %v2190 = vsel %vm2067, %v2189, %v2165
  %v2191 = vsel %vm2066, %v1288, %v2188
  %v2192 = vsel %vm2066, 0, %v2190
  %v2193 = vmul.f32 %v2191, %v2191
  %v2194 = vmul.f32 %v2193, -0.001358992
  %v2195 = vadd.f32 %v2194, 0.041655596
  %v2196 = vmul.f32 %v2193, %v2195
  %v2197 = vadd.f32 %v2196, -0.4999988
  %v2198 = vmul.f32 %v2193, %v2197
  %v2199 = vadd.f32 1.0, %v2198
  %v2200 = vmul.f32 %v2191, %v2191
  %v2201 = vmul.f32 %v2200, -0.00019511016
  %v2202 = vadd.f32 %v2201, 0.008332121
  %v2203 = vmul.f32 %v2200, %v2202
  %v2204 = vadd.f32 %v2203, -0.16666654
  %v2205 = vmul.f32 %v2200, %v2204
  %v2206 = vadd.f32 %v2205, 1.0
  %v2207 = vmul.f32 %v2206, %v2191
  %vm2208 = vweird.f32 %v1288
  %v2209 = vand.u32 %v2192, 3
  %vm2210 = vcmp.lt.s32.totalorder %v2209, 2
  %vm2211 = vcmp.eq.s32.totalorder %v2209, 0
  %v2212 = vxor.u32 %v2207, 2147483648
  %v2213 = vsel %vm2211, %v2199, %v2212
  %vm2214 = vcmp.eq.s32.totalorder %v2209, 2
  %v2215 = vxor.u32 %v2199, 2147483648
  %v2216 = vsel %vm2214, %v2215, %v2207
  %v2217 = vsel %vm2210, %v2213, %v2216
  %v2218 = vsel %vm2208, nan, %v2217
  %v2219 = vand.u32 2147483647, %v1289
  %vm2220 = vcmp.le.f32.partialorder %v2219, 0.7853982
  %vm2221 = vcmp.lt.s32.totalorder %v1289, 0
  %v2222 = vand.u32 %v1289, 2139095040
  %v2223 = vshrl.u32 %v2222, 23
  %v2224 = vsub.s32 %v2223, 127
  %v2225 = vand.u32 2147483647, %v1289
  %v2226 = vand.u32 %v2225, 8388607
  %v2227 = vor.u32 %v2226, 8388608
  %v2228 = vsub.s32 0, %v2227
  %v2229 = vadd.s32 %v2224, 1
  %vm2230 = vcmp.gt.s32.totalorder %v2229, 0
  %v2231 = vsel %vm2230, %v2229, 0
  %v2232 = vshrl.u32 %v2231, 5
  %v2233 = vand.u32 %v2231, 31
  %v2234 = vsub.s32 32, %v2233
  %v2235 = vshrl.u32 683565275, %v2234
  %v2236 = vshll.u32 683565275, %v2233
  %v2237 = vshrl.u32 2475754826, %v2234
  %v2238 = vor.u32 %v2236, %v2237
  %v2239 = vshll.u32 2475754826, %v2233
  %v2240 = vshrl.u32 2131351028, %v2234
  %v2241 = vor.u32 %v2239, %v2240
  %v2242 = vshll.u32 2131351028, %v2233
  %v2243 = vshrl.u32 2102212464, %v2234
  %v2244 = vor.u32 %v2242, %v2243
  %v2245 = vshll.u32 2102212464, %v2233
  %v2246 = vshrl.u32 920167782, %v2234
  %v2247 = vor.u32 %v2245, %v2246
  %v2248 = vshll.u32 920167782, %v2233
  %v2249 = vshrl.u32 1326507024, %v2234
  %v2250 = vor.u32 %v2248, %v2249
  %vm2251 = vcmp.lt.s32.totalorder %v2232, 1
  %vm2252 = vcmp.lt.s32.totalorder %v2232, 2
  %vm2253 = vcmp.lt.s32.totalorder %v2232, 3
  %vm2254 = vcmp.lt.s32.totalorder %v2232, 4
  %v2255 = vsel %vm2251, %v2235, %v2238
  %v2256 = vsel %vm2254, %v2244, 2102212464
  %v2257 = vsel %vm2253, %v2241, %v2256
  %v2258 = vsel %vm2252, %v2255, %v2257
  %v2259 = vsel %vm2251, %v2238, %v2241
  %v2260 = vsel %vm2254, %v2247, 920167782
  %v2261 = vsel %vm2253, %v2244, %v2260
  %v2262 = vsel %vm2252, %v2259, %v2261
  %v2263 = vsel %vm2251, %v2241, %v2244
  %v2264 = vsel %vm2254, %v2250, 1326507024
  %v2265 = vsel %vm2253, %v2247, %v2264
  %v2266 = vsel %vm2252, %v2263, %v2265
  %v2267 = vshll.u32 %v2227, 8
  %v2268 = vand.u32 %v2267, 65535
  %v2269 = vshrl.u32 %v2267, 16
  %v2270 = vand.u32 %v2266, 65535
  %v2271 = vshrl.u32 %v2266, 16
  %v2272 = vmul.u32 %v2268, %v2270
  %v2273 = vmul.u32 %v2268, %v2271
  %v2274 = vmul.u32 %v2269, %v2270
  %v2275 = vmul.u32 %v2269, %v2271
  %v2276 = vshll.u32 %v2273, 16
  %v2277 = vshrl.u32 %v2273, 16
  %v2278 = vshll.u32 %v2274, 16
  %v2279 = vshrl.u32 %v2274, 16
  %vm2280 = vc.u32 %v2272, %v2276
  %v2281 = vsel %vm2280, 1, 0
  %v2282 = vadd.s32 %v2272, %v2276
  %v2283 = vadd.s32 %v2275, %v2281
  %vm2284 = vc.u32 %v2282, %v2278
  %v2285 = vsel %vm2284, 1, 0
  %v2286 = vadd.s32 %v2282, %v2278
  %v2287 = vadd.s32 %v2283, %v2285
  %v2288 = vadd.s32 %v2287, %v2277
  %v2289 = vadd.s32 %v2288, %v2279
  %v2290 = vand.u32 %v2267, 65535
  %v2291 = vshrl.u32 %v2267, 16
  %v2292 = vand.u32 %v2262, 65535
  %v2293 = vshrl.u32 %v2262, 16
  %v2294 = vmul.u32 %v2290, %v2292
  %v2295 = vmul.u32 %v2290, %v2293
  %v2296 = vmul.u32 %v2291, %v2292
  %v2297 = vmul.u32 %v2291, %v2293
  %v2298 = vshll.u32 %v2295, 16
  %v2299 = vshrl.u32 %v2295, 16
  %v2300 = vshll.u32 %v2296, 16
  %v2301 = vshrl.u32 %v2296, 16
  %vm2302 = vc.u32 %v2294, %v2298
  %v2303 = vsel %vm2302, 1, 0
  %v2304 = vadd.s32 %v2294, %v2298
  %v2305 = vadd.s32 %v2297, %v2303
  %vm2306 = vc.u32 %v2304, %v2300
  %v2307 = vsel %vm2306, 1, 0
  %v2308 = vadd.s32 %v2304, %v2300
  %v2309 = vadd.s32 %v2305, %v2307
  %v2310 = vadd.s32 %v2309, %v2299
  %v2311 = vadd.s32 %v2310, %v2301
  %v2312 = vmul.u32 %v2267, %v2258
  %v2313 = vadd.s32 %v2289, %v2308
  %vm2314 = vc.u32 %v2289, %v2308
  %v2315 = vadd.s32 %v2311, 1
  %v2316 = vsel %vm2314, %v2315, %v2311
  %v2317 = vadd.s32 %v2312, %v2316
  %v2318 = vadd.s32 %v2317, 536870912
  %v2319 = vshrl.u32 %v2318, 30
  %v2320 = vshll.u32 %v2319, 30
  %v2321 = vsub.s32 %v2317, %v2320
  %vm2322 = vcmp.lt.s32.totalorder %v2321, 0
  %v2323 = vsub.s32 0, %v2321
  %v2324 = vsel %vm2322, %v2323, %v2321
  %v2325 = vclz %v2324
  %v2326 = vsub.s32 %v2325, 2
  %vm2327 = vcmp.gt.s32.totalorder 0, %v2326
  %v2328 = vsel %vm2327, 0, %v2326
  %v2329 = vsub.s32 32, %v2328
  %v2330 = vshll.u32 %v2321, %v2328
  %v2331 = vshrl.u32 %v2313, %v2329
  %v2332 = vor.u32 %v2330, %v2331
  %v2333 = vsub.s32 4294967266, %v2328
  %v2334 = vadd.s32 %v2333, 127
  %v2335 = vshll.u32 %v2334, 23
  %v2336 = vor.u32 4788187, %v2335
  %v2337 = vand.u32 2147483647, %v2336
  %v2339 = vcvt.s32.f32 %v2332
  %v2340 = vmul.f32 %v2339, %v2337
  %v2341 = vxor.u32 %v2340, 2147483648
  %v2342 = vsel %vm2221, %v2341, %v2340
  %v2343 = vsub.s32 4, %v2319
  %v2344 = vsel %vm2221, %v2343, %v2319
  %v2345 = vsel %vm2220, %v1289, %v2342
  %v2346 = vsel %vm2220, 0, %v2344
  %v2347 = vmul.f32 %v2345, %v2345
  %v2348 = vmul.f32 %v2347, -0.001358992
  %v2349 = vadd.f32 %v2348, 0.041655596
  %v2350 = vmul.f32 %v2347, %v2349
  %v2351 = vadd.f32 %v2350, -0.4999988
  %v2352 = vmul.f32 %v2347, %v2351
  %v2353 = vadd.f32 1.0, %v2352
  %v2354 = vmul.f32 %v2345, %v2345
  %v2355 = vmul.f32 %v2354, -0.00019511016
  %v2356 = vadd.f32 %v2355, 0.008332121
  %v2357 = vmul.f32 %v2354, %v2356
  %v2358 = vadd.f32 %v2357, -0.16666654
  %v2359 = vmul.f32 %v2354, %v2358
  %v2360 = vadd.f32 %v2359, 1.0
  %v2361 = vmul.f32 %v2360, %v2345
  %vm2362 = vweird.f32 %v1289
  %v2363 = vand.u32 %v2346, 3
  %vm2364 = vcmp.lt.s32.totalorder %v2363, 2
  %vm2365 = vcmp.eq.s32.totalorder %v2363, 0
  %v2366 = vxor.u32 %v2361, 2147483648
  %v2367 = vsel %vm2365, %v2353, %v2366
  %vm2368 = vcmp.eq.s32.totalorder %v2363, 2
  %v2369 = vxor.u32 %v2353, 2147483648
  %v2370 = vsel %vm2368, %v2369, %v2361
  %v2371 = vsel %vm2364, %v2367, %v2370
  %v2372 = vsel %vm2362, nan, %v2371
  %v2373 = vand.u32 2147483647, %v1290
  %vm2374 = vcmp.le.f32.partialorder %v2373, 0.7853982
  %vm2375 = vcmp.lt.s32.totalorder %v1290, 0
  %v2376 = vand.u32 %v1290, 2139095040
  %v2377 = vshrl.u32 %v2376, 23
  %v2378 = vsub.s32 %v2377, 127
  %v2379 = vand.u32 2147483647, %v1290
  %v2380 = vand.u32 %v2379, 8388607
  %v2381 = vor.u32 %v2380, 8388608
  %v2382 = vsub.s32 0, %v2381
  %v2383 = vadd.s32 %v2378, 1
  %vm2384 = vcmp.gt.s32.totalorder %v2383, 0
  %v2385 = vsel %vm2384, %v2383, 0
  %v2386 = vshrl.u32 %v2385, 5
  %v2387 = vand.u32 %v2385, 31
  %v2388 = vsub.s32 32, %v2387
  %v2389 = vshrl.u32 683565275, %v2388
  %v2390 = vshll.u32 683565275, %v2387
  %v2391 = vshrl.u32 2475754826, %v2388
  %v2392 = vor.u32 %v2390, %v2391
  %v2393 = vshll.u32 2475754826, %v2387
  %v2394 = vshrl.u32 2131351028, %v2388
  %v2395 = vor.u32 %v2393, %v2394
  %v2396 = vshll.u32 2131351028, %v2387
  %v2397 = vshrl.u32 2102212464, %v2388
  %v2398 = vor.u32 %v2396, %v2397
  %v2399 = vshll.u32 2102212464, %v2387
  %v2400 = vshrl.u32 920167782, %v2388
  %v2401 = vor.u32 %v2399, %v2400
  %v2402 = vshll.u32 920167782, %v2387
  %v2403 = vshrl.u32 1326507024, %v2388
  %v2404 = vor.u32 %v2402, %v2403
  %vm2405 = vcmp.lt.s32.totalorder %v2386, 1
  %vm2406 = vcmp.lt.s32.totalorder %v2386, 2
  %vm2407 = vcmp.lt.s32.totalorder %v2386, 3
  %vm2408 = vcmp.lt.s32.totalorder %v2386, 4
  %v2409 = vsel %vm2405, %v2389, %v2392
  %v2410 = vsel %vm2408, %v2398, 2102212464
  %v2411 = vsel %vm2407, %v2395, %v2410
  %v2412 = vsel %vm2406, %v2409, %v2411
  %v2413 = vsel %vm2405, %v2392, %v2395
  %v2414 = vsel %vm2408, %v2401, 920167782
  %v2415 = vsel %vm2407, %v2398, %v2414
  %v2416 = vsel %vm2406, %v2413, %v2415
  %v2417 = vsel %vm2405, %v2395, %v2398
  %v2418 = vsel %vm2408, %v2404, 1326507024
  %v2419 = vsel %vm2407, %v2401, %v2418
  %v2420 = vsel %vm2406, %v2417, %v2419
  %v2421 = vshll.u32 %v2381, 8
  %v2422 = vand.u32 %v2421, 65535
  %v2423 = vshrl.u32 %v2421, 16
  %v2424 = vand.u32 %v2420, 65535
  %v2425 = vshrl.u32 %v2420, 16
  %v2426 = vmul.u32 %v2422, %v2424
  %v2427 = vmul.u32 %v2422, %v2425
  %v2428 = vmul.u32 %v2423, %v2424
  %v2429 = vmul.u32 %v2423, %v2425
  %v2430 = vshll.u32 %v2427, 16
  %v2431 = vshrl.u32 %v2427, 16
  %v2432 = vshll.u32 %v2428, 16
  %v2433 = vshrl.u32 %v2428, 16
  %vm2434 = vc.u32 %v2426, %v2430
  %v2435 = vsel %vm2434, 1, 0
  %v2436 = vadd.s32 %v2426, %v2430
  %v2437 = vadd.s32 %v2429, %v2435
  %vm2438 = vc.u32 %v2436, %v2432
  %v2439 = vsel %vm2438, 1, 0
  %v2440 = vadd.s32 %v2436, %v2432
  %v2441 = vadd.s32 %v2437, %v2439
  %v2442 = vadd.s32 %v2441, %v2431
  %v2443 = vadd.s32 %v2442, %v2433
  %v2444 = vand.u32 %v2421, 65535
  %v2445 = vshrl.u32 %v2421, 16
  %v2446 = vand.u32 %v2416, 65535
  %v2447 = vshrl.u32 %v2416, 16
  %v2448 = vmul.u32 %v2444, %v2446
  %v2449 = vmul.u32 %v2444, %v2447
  %v2450 = vmul.u32 %v2445, %v2446
  %v2451 = vmul.u32 %v2445, %v2447
  %v2452 = vshll.u32 %v2449, 16
  %v2453 = vshrl.u32 %v2449, 16
  %v2454 = vshll.u32 %v2450, 16
  %v2455 = vshrl.u32 %v2450, 16
  %vm2456 = vc.u32 %v2448, %v2452
  %v2457 = vsel %vm2456, 1, 0
  %v2458 = vadd.s32 %v2448, %v2452
  %v2459 = vadd.s32 %v2451, %v2457
  %vm2460 = vc.u32 %v2458, %v2454
  %v2461 = vsel %vm2460, 1, 0
  %v2462 = vadd.s32 %v2458, %v2454
  %v2463 = vadd.s32 %v2459, %v2461
  %v2464 = vadd.s32 %v2463, %v2453
  %v2465 = vadd.s32 %v2464, %v2455
  %v2466 = vmul.u32 %v2421, %v2412
  %v2467 = vadd.s32 %v2443, %v2462
  %vm2468 = vc.u32 %v2443, %v2462
  %v2469 = vadd.s32 %v2465, 1
  %v2470 = vsel %vm2468, %v2469, %v2465
  %v2471 = vadd.s32 %v2466, %v2470
  %v2472 = vadd.s32 %v2471, 536870912
  %v2473 = vshrl.u32 %v2472, 30
  %v2474 = vshll.u32 %v2473, 30
  %v2475 = vsub.s32 %v2471, %v2474
  %vm2476 = vcmp.lt.s32.totalorder %v2475, 0
  %v2477 = vsub.s32 0, %v2475
  %v2478 = vsel %vm2476, %v2477, %v2475
  %v2479 = vclz %v2478
  %v2480 = vsub.s32 %v2479, 2
  %vm2481 = vcmp.gt.s32.totalorder 0, %v2480
  %v2482 = vsel %vm2481, 0, %v2480
  %v2483 = vsub.s32 32, %v2482
  %v2484 = vshll.u32 %v2475, %v2482
  %v2485 = vshrl.u32 %v2467, %v2483
  %v2486 = vor.u32 %v2484, %v2485
  %v2487 = vsub.s32 4294967266, %v2482
  %v2488 = vadd.s32 %v2487, 127
  %v2489 = vshll.u32 %v2488, 23
  %v2490 = vor.u32 4788187, %v2489
  %v2491 = vand.u32 2147483647, %v2490
  %v2493 = vcvt.s32.f32 %v2486
  %v2494 = vmul.f32 %v2493, %v2491
  %v2495 = vxor.u32 %v2494, 2147483648
  %v2496 = vsel %vm2375, %v2495, %v2494
  %v2497 = vsub.s32 4, %v2473
  %v2498 = vsel %vm2375, %v2497, %v2473
  %v2499 = vsel %vm2374, %v1290, %v2496
  %v2500 = vsel %vm2374, 0, %v2498
  %v2501 = vmul.f32 %v2499, %v2499
  %v2502 = vmul.f32 %v2501, -0.001358992
  %v2503 = vadd.f32 %v2502, 0.041655596
  %v2504 = vmul.f32 %v2501, %v2503
  %v2505 = vadd.f32 %v2504, -0.4999988
  %v2506 = vmul.f32 %v2501, %v2505
  %v2507 = vadd.f32 1.0, %v2506
  %v2508 = vmul.f32 %v2499, %v2499
  %v2509 = vmul.f32 %v2508, -0.00019511016
  %v2510 = vadd.f32 %v2509, 0.008332121
  %v2511 = vmul.f32 %v2508, %v2510
  %v2512 = vadd.f32 %v2511, -0.16666654
  %v2513 = vmul.f32 %v2508, %v2512
  %v2514 = vadd.f32 %v2513, 1.0
  %v2515 = vmul.f32 %v2514, %v2499
  %vm2516 = vweird.f32 %v1290
  %v2517 = vand.u32 %v2500, 3
  %vm2518 = vcmp.lt.s32.totalorder %v2517, 2
  %vm2519 = vcmp.eq.s32.totalorder %v2517, 0
  %v2520 = vxor.u32 %v2515, 2147483648
  %v2521 = vsel %vm2519, %v2507, %v2520
  %vm2522 = vcmp.eq.s32.totalorder %v2517, 2
  %v2523 = vxor.u32 %v2507, 2147483648
  %v2524 = vsel %vm2522, %v2523, %v2515
  %v2525 = vsel %vm2518, %v2521, %v2524
  %v2526 = vsel %vm2516, nan, %v2525
  %s2527 = scalar_lea.vmem %s1, 128
  %2528 = vst [vmem:[%s2527] sm:$0xff] %v1445
  %2529 = vst [vmem:[%s2527 + $0x8] sm:$0xff] %v1600
  %2530 = vst [vmem:[%s2527 + $0x10] sm:$0xff] %v1755
  %2531 = vst [vmem:[%s2527 + $0x18] sm:$0xff] %v1910
  %s2532 = scalar_lea.vmem %s1, 160
  %2533 = vst [vmem:[%s2532] sm:$0xff] %v2064
  %2534 = vst [vmem:[%s2532 + $0x8] sm:$0xff] %v2218
  %2535 = vst [vmem:[%s2532 + $0x10] sm:$0xff] %v2372
  %2536 = vst [vmem:[%s2532 + $0x18] sm:$0xff] %v2526
  %v2537 = vmul.f32 %v1445, 2.0
  %v2538 = vmul.f32 %v1600, 2.0
  %v2539 = vmul.f32 %v1755, 2.0
  %v2540 = vmul.f32 %v1910, 2.0
  %v2541 = vmul.f32 %v2537, %v2064
  %v2542 = vmul.f32 %v2538, %v2218
  %v2543 = vmul.f32 %v2539, %v2372
  %v2544 = vmul.f32 %v2540, %v2526
  %v2545 = vmul.f32 %v2064, 2.0
  %v2546 = vmul.f32 %v2218, 2.0
  %v2547 = vmul.f32 %v2372, 2.0
  %v2548 = vmul.f32 %v2526, 2.0
  %v2549 = vmul.f32 %v2545, %v2064
  %v2550 = vmul.f32 %v2546, %v2218
  %v2551 = vmul.f32 %v2547, %v2372
  %v2552 = vmul.f32 %v2548, %v2526
  %v2553 = vsub.f32 %v2549, 1.0
  %v2554 = vsub.f32 %v2550, 1.0
  %v2555 = vsub.f32 %v2551, 1.0
  %v2556 = vsub.f32 %v2552, 1.0
  %s2557 = scalar_lea.vmem %s1, 192
  %2558 = vst [vmem:[%s2557] sm:$0xff] %v2541
  %2559 = vst [vmem:[%s2557 + $0x8] sm:$0xff] %v2542
  %2560 = vst [vmem:[%s2557 + $0x10] sm:$0xff] %v2543
  %2561 = vst [vmem:[%s2557 + $0x18] sm:$0xff] %v2544
  %s2562 = scalar_lea.vmem %s1, 224
  %2563 = vst [vmem:[%s2562] sm:$0xff] %v2553
  %2564 = vst [vmem:[%s2562 + $0x8] sm:$0xff] %v2554
  %2565 = vst [vmem:[%s2562 + $0x10] sm:$0xff] %v2555
  %2566 = vst [vmem:[%s2562 + $0x18] sm:$0xff] %v2556
  // Predicated region
  $region6: #{_pos_embedding_impl.1} parent=0 // pred_check
    _
  $region7: #{_pos_embedding_impl.1} parent=0 // pred_check_branch
    %2568 = sbr.rel (0) target = $region9
  $region8: #{_pos_embedding_impl.1} parent=0 // pred_region
    _
  $region9: #{_pos_embedding_impl.1} parent=0 // pred_fallthru
    _
  // Predicated region
  $region10: #{_pos_embedding_impl.1} parent=0 // pred_check
    _
  $region11: #{_pos_embedding_impl.1} parent=0 // pred_check_branch
    %2570 = sbr.rel (0) target = $region13
  $region12: #{_pos_embedding_impl.1} parent=0 // pred_region
    _
  $region13: #{_pos_embedding_impl.1} parent=0 // pred_fallthru
    _

</llo_original>
